<compile_context>
chip_gen: v5e
topology: v5e:2x2
jax: 0.10.0
libtpu: 0.0.40
codegen_flags: <defaults>
</compile_context>

<pallas_src>
import functools

import jax
import jax.numpy as jnp
from jax.experimental import pallas as pl
from jax.experimental.pallas import tpu as pltpu

# ---------------- synthetic "small" BERT config ----------------
N_BATCH = 2
SEQ_LEN = 8
HIDDEN = 32
N_HEADS = 2
HEAD_DIM = HIDDEN // N_HEADS
FFN = 64
VOCAB = 128
N_LAYERS = 2
MAX_POS = 16
PAD_TOKEN_ID = 0        # stands in for hf_tokenizer.pad_token_id
LN_EPS = 1e-12
MASK_BIAS = -10000.0

TOKEN_BLOCK = 256        # row tile for token-parallel kernels (falls back to full M at toy size)
CE_TOKEN_BLOCK = 256     # token tile for the fused decoder+CE kernel
VOCAB_BLOCK = 512        # vocab stripe for fused decoder+CE (falls back to full V at toy size)
ATTN_ROWS_TARGET = 256   # aim for ~nb*L ~ 256 MXU rows per attention grid step

# Scoped VMEM budget: leaves headroom inside v7x's 64 MiB/TC physical VMEM and is
# comfortably within v5e/v6e's 128 MiB.
VMEM_LIMIT_BYTES = 48 * 1024 * 1024


def _compiler_params(sem):
    return pltpu.CompilerParams(dimension_semantics=sem,
                                vmem_limit_bytes=VMEM_LIMIT_BYTES)


def _layernorm_f32(y, g, b):
    mean = jnp.mean(y, axis=-1, keepdims=True)
    var = jnp.mean((y - mean) ** 2, axis=-1, keepdims=True)
    return (y - mean) * jax.lax.rsqrt(var + LN_EPS) * g + b


# ---------------- kernel 1: matmul + bias (+GELU) (+residual) (+LayerNorm) ----------------

def _linear_kernel(*refs, gelu, has_residual, has_ln):
    x_ref, w_ref, b_ref = refs[0], refs[1], refs[2]
    o_ref = refs[-1]
    idx = 3
    res_ref = g_ref = beta_ref = None
    if has_residual:
        res_ref = refs[idx]; idx += 1
    if has_ln:
        g_ref, beta_ref = refs[idx], refs[idx + 1]; idx += 2

    # x/w arrive as bf16 (no per-step casts); MXU accumulates f32; epilogue stays f32.
    y = jnp.dot(x_ref[...], w_ref[...], preferred_element_type=jnp.float32)
    y = y + b_ref[...]
    if gelu:
        # TODO(synk): HF BertIntermediate uses exact erf GELU; tanh approximation differs slightly.
        y = jax.nn.gelu(y, approximate=True)
    if has_residual:
        y = y + res_ref[...].astype(jnp.float32)
    if has_ln:
        y = _layernorm_f32(y, g_ref[...], beta_ref[...])
    o_ref[...] = y.astype(o_ref.dtype)


def fused_linear(x, w, b, *, gelu=False, residual=None, ln=None):
    M, K = x.shape
    Nout = w.shape[1]
    # TODO(synk): at real hidden sizes on v7x, tile K with an "arbitrary" reduction axis
    # plus a VMEM f32 accumulator instead of keeping the full (K, Nout) weight resident.
    bm = TOKEN_BLOCK if M % TOKEN_BLOCK == 0 else M
    in_specs = [
        pl.BlockSpec((bm, K), lambda i: (i, 0)),
        pl.BlockSpec((K, Nout), lambda i: (0, 0)),
        pl.BlockSpec((1, Nout), lambda i: (0, 0)),
    ]
    args = [x, w, b.reshape(1, Nout)]
    if residual is not None:
        in_specs.append(pl.BlockSpec((bm, Nout), lambda i: (i, 0)))
        args.append(residual)
    if ln is not None:
        g, beta = ln
        in_specs += [pl.BlockSpec((1, Nout), lambda i: (0, 0)),
                     pl.BlockSpec((1, Nout), lambda i: (0, 0))]
        args += [g.reshape(1, Nout), beta.reshape(1, Nout)]
    return pl.pallas_call(
        functools.partial(_linear_kernel, gelu=gelu,
                          has_residual=residual is not None,
                          has_ln=ln is not None),
        out_shape=jax.ShapeDtypeStruct((M, Nout), jnp.bfloat16),
        grid=(M // bm,),
        in_specs=in_specs,
        out_specs=pl.BlockSpec((bm, Nout), lambda i: (i, 0)),
        compiler_params=_compiler_params(("parallel",)),
    )(*args)


# ---------------- kernel 2: embedding sum + LayerNorm ----------------

def _embed_ln_kernel(we_ref, pe_ref, te_ref, g_ref, b_ref, o_ref):
    y = (we_ref[...].astype(jnp.float32)
         + pe_ref[...].astype(jnp.float32)
         + te_ref[...].astype(jnp.float32))
    o_ref[...] = _layernorm_f32(y, g_ref[...], b_ref[...]).astype(o_ref.dtype)


def embed_layernorm(we, pe, te, g, b):
    M, D = we.shape
    bm = TOKEN_BLOCK if M % TOKEN_BLOCK == 0 else M
    row = pl.BlockSpec((bm, D), lambda i: (i, 0))
    vec = pl.BlockSpec((1, D), lambda i: (0, 0))
    return pl.pallas_call(
        _embed_ln_kernel,
        out_shape=jax.ShapeDtypeStruct((M, D), jnp.bfloat16),
        grid=(M // bm,),
        in_specs=[row, row, row, vec, vec],
        out_specs=row,
        compiler_params=_compiler_params(("parallel",)),
    )(we, pe, te, g.reshape(1, D), b.reshape(1, D))


# ---------------- kernel 3: fused QKV projection + multi-head attention ----------------
# Lane-dense I/O: input (nb, L, HIDDEN), output (nb, L, HIDDEN); q/k/v and heads are
# sliced/merged inside the kernel so nothing with a Dh-wide inner dim ever hits HBM.

def _attn_kernel(x_ref, w_ref, b_ref, bias_ref, o_ref, *, n_heads, scale):
    nb, l, hsz = x_ref.shape
    dh = hsz // n_heads

    # Fused QKV projection: (nb*L, H) @ (H, 3H) on the MXU, f32 accumulation.
    x2 = x_ref[...].reshape(nb * l, hsz)
    qkv = jnp.dot(x2, w_ref[...], preferred_element_type=jnp.float32) + b_ref[...]
    qkv = qkv.reshape(nb, l, 3 * hsz)

    bias = bias_ref[...][:, None, :]                       # (nb, 1, L) additive key mask

    # TODO(synk): for real SEQ_LEN switch to flash-style KV tiling (kv axis as a trailing
    # "arbitrary" grid dim with m/l/acc VMEM scratch) so (L, L) scores never materialize.
    ctx_heads = []
    for hd in range(n_heads):                              # static unroll over heads
        q = qkv[:, :, hd * dh:(hd + 1) * dh] * scale       # scale folded into q
        k = qkv[:, :, hsz + hd * dh: hsz + (hd + 1) * dh]
        v = qkv[:, :, 2 * hsz + hd * dh: 2 * hsz + (hd + 1) * dh]
        s = jnp.einsum("bqd,bkd->bqk",
                       q.astype(jnp.bfloat16), k.astype(jnp.bfloat16),
                       preferred_element_type=jnp.float32)
        s = s + bias
        s = s - jnp.max(s, axis=-1, keepdims=True)
        p = jnp.exp(s)
        p = p * pl.reciprocal(jnp.sum(p, axis=-1, keepdims=True), approx=True)
        ctx_heads.append(jnp.einsum("bqk,bkd->bqd",
                                    p.astype(jnp.bfloat16), v.astype(jnp.bfloat16),
                                    preferred_element_type=jnp.float32))
    ctx = jnp.concatenate(ctx_heads, axis=-1)              # heads merged in-kernel
    o_ref[...] = ctx.astype(o_ref.dtype)


def _attention_batch_block(n, l):
    # Largest divisor of n with nb*l <= ATTN_ROWS_TARGET (wide MXU rows per step); the
    # remaining grid length feeds v7x's two TensorCores at real batch sizes.
    nb = 1
    for d in range(1, n + 1):
        if n % d == 0 and d * l <= ATTN_ROWS_TARGET:
            nb = d
    return nb


def attention_qkv(h3, w, b, bias, *, n_heads):
    N, L, H = h3.shape
    nb = _attention_batch_block(N, L)
    scale = 1.0 / float(H // n_heads) ** 0.5
    return pl.pallas_call(
        functools.partial(_attn_kernel, n_heads=n_heads, scale=scale),
        out_shape=jax.ShapeDtypeStruct((N, L, H), jnp.bfloat16),
        grid=(N // nb,),
        in_specs=[
            pl.BlockSpec((nb, L, H), lambda i: (i, 0, 0)),
            pl.BlockSpec((H, 3 * H), lambda i: (0, 0)),
            pl.BlockSpec((1, 3 * H), lambda i: (0, 0)),
            pl.BlockSpec((nb, L), lambda i: (i, 0)),
        ],
        out_specs=pl.BlockSpec((nb, L, H), lambda i: (i, 0, 0)),
        compiler_params=_compiler_params(("parallel",)),
    )(h3, w, b.reshape(1, 3 * H), bias)


# ---------------- kernel 4: fused decoder matmul + cross-entropy (token x vocab tiles) ----------------

def _decoder_ce_kernel(x_ref, w_ref, b_ref, lab_ref, loss_ref, acc_sc):
    j = pl.program_id(1)
    tv = w_ref.shape[1]

    @pl.when(j == 0)
    def _():
        # Merged state buffer: col 0 = running max, col 1 = running sum, col 2 = picked logit.
        lane = jax.lax.broadcasted_iota(jnp.int32, acc_sc.shape, 1)
        acc_sc[...] = jnp.where(lane == 0, -1e30, 0.0).astype(jnp.float32)

    # Logits for this (token tile, vocab stripe); never written to HBM.
    logits = jnp.dot(x_ref[...], w_ref[...],
                     preferred_element_type=jnp.float32) + b_ref[...]      # (tt, tv)

    labels = lab_ref[...]                                                  # (tt, 1) int32
    state = acc_sc[...]
    m, lsum, pick = state[:, 0:1], state[:, 1:2], state[:, 2:3]

    col = jax.lax.broadcasted_iota(jnp.int32, logits.shape, 1) + j * tv
    pick = pick + jnp.sum(jnp.where(col == labels, logits, 0.0),
                          axis=-1, keepdims=True)

    # Online logsumexp accumulation over vocab stripes.
    m_new = jnp.maximum(m, jnp.max(logits, axis=-1, keepdims=True))
    l_new = lsum * jnp.exp(m - m_new) + jnp.sum(jnp.exp(logits - m_new),
                                                axis=-1, keepdims=True)
    acc_sc[...] = jnp.concatenate([m_new, l_new, pick], axis=-1)

    @pl.when(j == pl.num_programs(1) - 1)
    def _():
        lse = m_new + jnp.log(l_new)
        valid = labels != -100                      # CrossEntropyLoss ignore_index=-100
        loss_ref[...] = jnp.sum(jnp.where(valid, lse - pick, 0.0), keepdims=True)


def decoder_cross_entropy_partial_sums(x, w, b, labels):
    T, H = x.shape
    V = w.shape[1]
    tt = CE_TOKEN_BLOCK if T % CE_TOKEN_BLOCK == 0 else T
    tv = VOCAB_BLOCK if V % VOCAB_BLOCK == 0 else V
    nt = T // tt
    return pl.pallas_call(
        _decoder_ce_kernel,
        out_shape=jax.ShapeDtypeStruct((nt, 1), jnp.float32),
        grid=(nt, V // tv),                         # token-parallel outer, vocab inner
        in_specs=[
            pl.BlockSpec((tt, H), lambda i, j: (i, 0)),
            pl.BlockSpec((H, tv), lambda i, j: (0, j)),
            pl.BlockSpec((1, tv), lambda i, j: (0, j)),
            pl.BlockSpec((tt, 1), lambda i, j: (i, 0)),
        ],
        out_specs=pl.BlockSpec((1, 1), lambda i, j: (i, 0)),
        scratch_shapes=[pltpu.VMEM((tt, 3), jnp.float32)],
        compiler_params=_compiler_params(("parallel", "arbitrary")),
    )(x, w, b.reshape(1, V), labels.reshape(T, 1).astype(jnp.int32))


# ---------------- model glue around the kernels ----------------

def encoder_layer(p, h, bias, n, l):
    # TODO(synk): at real sizes fuse the whole layer into one pallas_call with
    # pltpu.emit_pipeline over the K/FFN contraction dims.
    h3 = h.reshape(n, l, HIDDEN)                                       # free metadata reshape
    ctx = attention_qkv(h3, p["qkv_w"], p["qkv_b"], bias, n_heads=N_HEADS)
    h = fused_linear(ctx.reshape(n * l, HIDDEN), p["o_w"], p["o_b"],
                     residual=h, ln=(p["ln1_g"], p["ln1_b"]))          # o-proj + residual + LN
    ffn = fused_linear(h, p["i_w"], p["i_b"], gelu=True)               # FFN-in + GELU
    h = fused_linear(ffn, p["f_w"], p["f_b"],
                     residual=h, ln=(p["ln2_g"], p["ln2_b"]))          # FFN-out + residual + LN
    return h


def bert_forward(params, input_ids, attention_mask, token_type_ids):
    n, l = input_ids.shape
    t = n * l
    # TODO(synk): at real vocab sizes the word-embedding gather should be fused into the
    # LN kernel via PrefetchScalarGridSpec row gather; at toy size the XLA gather is fine.
    we = params["word_emb"][input_ids].reshape(t, HIDDEN)
    pe = jnp.broadcast_to(params["pos_emb"][:l][None], (n, l, HIDDEN)).reshape(t, HIDDEN)
    te = params["type_emb"][token_type_ids].reshape(t, HIDDEN)
    h = embed_layernorm(we, pe, te, params["emb_ln_g"], params["emb_ln_b"])

    bias = (1.0 - attention_mask.astype(jnp.float32)) * MASK_BIAS          # (N, L) key mask

    for lp in params["layers"]:
        h = encoder_layer(lp, h, bias, n, l)

    # MLM prediction-head transform: dense + GELU + LayerNorm fused in one kernel.
    return fused_linear(h, params["mlm_dense_w"], params["mlm_dense_b"],
                        gelu=True, ln=(params["mlm_ln_g"], params["mlm_ln_b"]))


def bert_model_with_loss(params, input_ids, labels):
    attention_mask = input_ids != PAD_TOKEN_ID
    token_type_ids = (~attention_mask).astype(jnp.int32)
    mlm_mask = labels != -100

    x = bert_forward(params, input_ids, attention_mask, token_type_ids)     # (N*L, H) bf16
    # Decoder matmul + CE fused: the (N*L, V) logits slab never materializes in HBM.
    loss_sum = jnp.sum(decoder_cross_entropy_partial_sums(
        x, params["decoder_w"], params["decoder_b"], labels.reshape(-1)))

    mlm_count = jnp.sum(mlm_mask).astype(jnp.float32)
    bert_loss = loss_sum / jnp.maximum(mlm_count, 1.0)        # masked mean, zero-target safe
    mlm_ratio = mlm_count / jnp.sum(attention_mask).astype(jnp.float32)
    # TODO(synk): probe branch (POS-class EMA scores / global_dict / wandb dict) is
    # host-side bookkeeping with no kernel equivalent; only mlm_ratio is kept.
    return bert_loss, {"mlm_ratio": mlm_ratio}


# ---------------- deterministic parameter init ----------------

def init_params(key):
    keys = iter(jax.random.split(key, 64))

    def nrm(shape, scale=0.02):
        # Weights/embeddings stored bf16: half the HBM DMA bytes per kernel; matmuls
        # still accumulate in f32 inside the kernels.
        return (scale * jax.random.normal(next(keys), shape, jnp.float32)).astype(jnp.bfloat16)

    def layer_params():
        return {
            "qkv_w": nrm((HIDDEN, 3 * HIDDEN)),                       # [q | k | v] fused
            "qkv_b": jnp.zeros((3 * HIDDEN,), jnp.float32),
            "o_w": nrm((HIDDEN, HIDDEN)), "o_b": jnp.zeros((HIDDEN,), jnp.float32),
            "ln1_g": jnp.ones((HIDDEN,), jnp.float32),
            "ln1_b": jnp.zeros((HIDDEN,), jnp.float32),
            "i_w": nrm((HIDDEN, FFN)), "i_b": jnp.zeros((FFN,), jnp.float32),
            "f_w": nrm((FFN, HIDDEN)), "f_b": jnp.zeros((HIDDEN,), jnp.float32),
            "ln2_g": jnp.ones((HIDDEN,), jnp.float32),
            "ln2_b": jnp.zeros((HIDDEN,), jnp.float32),
        }

    return {
        "word_emb": nrm((VOCAB, HIDDEN)),
        "pos_emb": nrm((MAX_POS, HIDDEN)),
        "type_emb": nrm((2, HIDDEN)),
        "emb_ln_g": jnp.ones((HIDDEN,), jnp.float32),
        "emb_ln_b": jnp.zeros((HIDDEN,), jnp.float32),
        "layers": [layer_params() for _ in range(N_LAYERS)],
        "mlm_dense_w": nrm((HIDDEN, HIDDEN)),
        "mlm_dense_b": jnp.zeros((HIDDEN,), jnp.float32),
        "mlm_ln_g": jnp.ones((HIDDEN,), jnp.float32),
        "mlm_ln_b": jnp.zeros((HIDDEN,), jnp.float32),
        "decoder_w": nrm((HIDDEN, VOCAB)),
        "decoder_b": jnp.zeros((VOCAB,), jnp.float32),
    }


if __name__ == "__main__":
    key = jax.random.PRNGKey(0)
    k_ids, k_lab, k_par = jax.random.split(key, 3)

    # input_ids: random tokens with trailing padding (pad id 0)
    input_ids = jax.random.randint(k_ids, (N_BATCH, SEQ_LEN), 1, VOCAB, dtype=jnp.int32)
    seq_lens = jnp.array([[6], [7]], dtype=jnp.int32)
    pad_pos = jnp.arange(SEQ_LEN, dtype=jnp.int32)[None, :] >= seq_lens
    input_ids = jnp.where(pad_pos, PAD_TOKEN_ID, input_ids)

    # labels: -100 everywhere except ~25% of the non-pad positions (MLM targets)
    rand_lab = jax.random.randint(k_lab, (N_BATCH, SEQ_LEN), 0, VOCAB, dtype=jnp.int32)
    mlm_sel = (jnp.arange(SEQ_LEN)[None, :] % 4 == 1) & (~pad_pos)
    labels = jnp.where(mlm_sel, rand_lab, jnp.full_like(rand_lab, -100))

    params = init_params(k_par)

    loss_fn = jax.jit(bert_model_with_loss)
    loss, metrics = loss_fn(params, input_ids, labels)
    jax.block_until_ready((loss, metrics))

    assert loss.shape == () and jnp.isfinite(loss)
    assert metrics["mlm_ratio"].shape == ()
    print("KERNEL_OK")
</pallas_src>

<mosaic_0001>
module attributes {stable_mosaic.version = 11 : i64} {
  func.func @_embed_ln_kernel(%arg0: i32, %arg1: memref<16x32xbf16, #tpu.memory_space<vmem>>, %arg2: memref<16x32xbf16, #tpu.memory_space<vmem>>, %arg3: memref<16x32xbf16, #tpu.memory_space<vmem>>, %arg4: memref<1x32xf32, #tpu.memory_space<vmem>>, %arg5: memref<1x32xf32, #tpu.memory_space<vmem>>, %arg6: memref<16x32xbf16, #tpu.memory_space<vmem>>) attributes {dimension_semantics = [#tpu.dimension_semantics<parallel>], iteration_bounds = array<i64: 1>, scalar_prefetch = 0 : i64, scratch_operands = 0 : i64, tpu.core_type = #tpu.core_type<tc>, window_params = [{transform_indices = @transform_0, window_bounds = array<i64: 16, 32>}, {transform_indices = @transform_1, window_bounds = array<i64: 16, 32>}, {transform_indices = @transform_2, window_bounds = array<i64: 16, 32>}, {pipeline_mode = #tpu.pipeline_mode<synchronous>, transform_indices = @transform_3, window_bounds = array<i64: 1, 32>}, {pipeline_mode = #tpu.pipeline_mode<synchronous>, transform_indices = @transform_4, window_bounds = array<i64: 1, 32>}, {transform_indices = @transform_5, window_bounds = array<i64: 16, 32>}]} {
    %c0 = arith.constant 0 : index
    %c0_0 = arith.constant 0 : index
    %0 = vector.load %arg1[%c0, %c0_0] : memref<16x32xbf16, #tpu.memory_space<vmem>>, vector<16x32xbf16>
    %1 = arith.extf %0 : vector<16x32xbf16> to vector<16x32xf32>
    %c0_1 = arith.constant 0 : index
    %c0_2 = arith.constant 0 : index
    %2 = vector.load %arg2[%c0_1, %c0_2] : memref<16x32xbf16, #tpu.memory_space<vmem>>, vector<16x32xbf16>
    %3 = arith.extf %2 : vector<16x32xbf16> to vector<16x32xf32>
    %4 = arith.addf %1, %3 : vector<16x32xf32>
    %c0_3 = arith.constant 0 : index
    %c0_4 = arith.constant 0 : index
    %5 = vector.load %arg3[%c0_3, %c0_4] : memref<16x32xbf16, #tpu.memory_space<vmem>>, vector<16x32xbf16>
    %6 = arith.extf %5 : vector<16x32xbf16> to vector<16x32xf32>
    %7 = arith.addf %4, %6 : vector<16x32xf32>
    %c0_5 = arith.constant 0 : index
    %c0_6 = arith.constant 0 : index
    %8 = vector.load %arg4[%c0_5, %c0_6] : memref<1x32xf32, #tpu.memory_space<vmem>>, vector<1x32xf32>
    %c0_7 = arith.constant 0 : index
    %c0_8 = arith.constant 0 : index
    %9 = vector.load %arg5[%c0_7, %c0_8] : memref<1x32xf32, #tpu.memory_space<vmem>>, vector<1x32xf32>
    %cst = arith.constant dense<0.000000e+00> : vector<16xf32>
    %10 = vector.multi_reduction <add>, %7, %cst [1] : vector<16x32xf32> to vector<16xf32>
    %11 = vector.shape_cast %10 : vector<16xf32> to vector<16x1xf32>
    %cst_9 = arith.constant 3.200000e+01 : f32
    %12 = vector.broadcast %cst_9 : f32 to vector<16x1xf32>
    %13 = arith.divf %11, %12 : vector<16x1xf32>
    %14 = vector.broadcast %13 : vector<16x1xf32> to vector<16x32xf32>
    %15 = arith.subf %7, %14 : vector<16x32xf32>
    %16 = arith.mulf %15, %15 : vector<16x32xf32>
    %cst_10 = arith.constant dense<0.000000e+00> : vector<16xf32>
    %17 = vector.multi_reduction <add>, %16, %cst_10 [1] : vector<16x32xf32> to vector<16xf32>
    %18 = vector.shape_cast %17 : vector<16xf32> to vector<16x1xf32>
    %cst_11 = arith.constant 3.200000e+01 : f32
    %19 = vector.broadcast %cst_11 : f32 to vector<16x1xf32>
    %20 = arith.divf %18, %19 : vector<16x1xf32>
    %21 = vector.broadcast %13 : vector<16x1xf32> to vector<16x32xf32>
    %22 = arith.subf %7, %21 : vector<16x32xf32>
    %cst_12 = arith.constant 9.99999996E-13 : f32
    %23 = vector.broadcast %cst_12 : f32 to vector<16x1xf32>
    %24 = arith.addf %20, %23 : vector<16x1xf32>
    %25 = math.rsqrt %24 : vector<16x1xf32>
    %26 = vector.broadcast %25 : vector<16x1xf32> to vector<16x32xf32>
    %27 = arith.mulf %22, %26 : vector<16x32xf32>
    %28 = vector.broadcast %8 : vector<1x32xf32> to vector<16x32xf32>
    %29 = arith.mulf %27, %28 : vector<16x32xf32>
    %30 = vector.broadcast %9 : vector<1x32xf32> to vector<16x32xf32>
    %31 = arith.addf %29, %30 : vector<16x32xf32>
    %32 = arith.truncf %31 : vector<16x32xf32> to vector<16x32xbf16>
    %c0_13 = arith.constant 0 : index
    %c0_14 = arith.constant 0 : index
    %33 = vector.load %arg6[%c0_13, %c0_14] : memref<16x32xbf16, #tpu.memory_space<vmem>>, vector<16x32xbf16>
    tpu.vector_store %arg6[%c0_13, %c0_14], %32 {strides = array<i32>} : memref<16x32xbf16, #tpu.memory_space<vmem>>, vector<16x32xbf16>,
    return
  }
  func.func @transform_0(%arg0: i32) -> (i32, i32) {
    %c0_i32 = arith.constant 0 : i32
    %c0_i32_0 = arith.constant 0 : i32
    return %arg0, %c0_i32 : i32, i32
  }
  func.func @transform_1(%arg0: i32) -> (i32, i32) {
    %c0_i32 = arith.constant 0 : i32
    %c0_i32_0 = arith.constant 0 : i32
    return %arg0, %c0_i32 : i32, i32
  }
  func.func @transform_2(%arg0: i32) -> (i32, i32) {
    %c0_i32 = arith.constant 0 : i32
    %c0_i32_0 = arith.constant 0 : i32
    return %arg0, %c0_i32 : i32, i32
  }
  func.func @transform_3(%arg0: i32) -> (i32, i32) {
    %c0_i32 = arith.constant 0 : i32
    %c0_i32_0 = arith.constant 0 : i32
    %c0_i32_1 = arith.constant 0 : i32
    return %c0_i32, %c0_i32_0 : i32, i32
  }
  func.func @transform_4(%arg0: i32) -> (i32, i32) {
    %c0_i32 = arith.constant 0 : i32
    %c0_i32_0 = arith.constant 0 : i32
    %c0_i32_1 = arith.constant 0 : i32
    return %c0_i32, %c0_i32_0 : i32, i32
  }
  func.func @transform_5(%arg0: i32) -> (i32, i32) {
    %c0_i32 = arith.constant 0 : i32
    %c0_i32_0 = arith.constant 0 : i32
    return %arg0, %c0_i32 : i32, i32
  }
}

module attributes {stable_mosaic.version = 11 : i64} {
  func.func @_linear_kernel(%arg0: i32, %arg1: memref<16x32xbf16, #tpu.memory_space<vmem>>, %arg2: memref<32x32xbf16, #tpu.memory_space<vmem>>, %arg3: memref<1x32xf32, #tpu.memory_space<vmem>>, %arg4: memref<16x32xbf16, #tpu.memory_space<vmem>>, %arg5: memref<1x32xf32, #tpu.memory_space<vmem>>, %arg6: memref<1x32xf32, #tpu.memory_space<vmem>>, %arg7: memref<16x32xbf16, #tpu.memory_space<vmem>>) attributes {dimension_semantics = [#tpu.dimension_semantics<parallel>], iteration_bounds = array<i64: 1>, scalar_prefetch = 0 : i64, scratch_operands = 0 : i64, tpu.core_type = #tpu.core_type<tc>, window_params = [{transform_indices = @transform_0, window_bounds = array<i64: 16, 32>}, {pipeline_mode = #tpu.pipeline_mode<synchronous>, transform_indices = @transform_1, window_bounds = array<i64: 32, 32>}, {pipeline_mode = #tpu.pipeline_mode<synchronous>, transform_indices = @transform_2, window_bounds = array<i64: 1, 32>}, {transform_indices = @transform_3, window_bounds = array<i64: 16, 32>}, {pipeline_mode = #tpu.pipeline_mode<synchronous>, transform_indices = @transform_4, window_bounds = array<i64: 1, 32>}, {pipeline_mode = #tpu.pipeline_mode<synchronous>, transform_indices = @transform_5, window_bounds = array<i64: 1, 32>}, {transform_indices = @transform_6, window_bounds = array<i64: 16, 32>}]} {
    %c0 = arith.constant 0 : index
    %c0_0 = arith.constant 0 : index
    %0 = vector.load %arg1[%c0, %c0_0] : memref<16x32xbf16, #tpu.memory_space<vmem>>, vector<16x32xbf16>
    %c0_1 = arith.constant 0 : index
    %c0_2 = arith.constant 0 : index
    %1 = vector.load %arg2[%c0_1, %c0_2] : memref<32x32xbf16, #tpu.memory_space<vmem>>, vector<32x32xbf16>
    %cst = arith.constant dense<0.000000e+00> : vector<16x32xf32>
    %2 = tpu.matmul %0, %1, %cst {dimension_numbers = #tpu.dot_dimension_numbers<[1], [0], [0], [1], [0, 0, 1, 1], [], []>} : vector<16x32xbf16>, vector<32x32xbf16>, vector<16x32xf32> -> vector<16x32xf32>
    %c0_3 = arith.constant 0 : index
    %c0_4 = arith.constant 0 : index
    %3 = vector.load %arg3[%c0_3, %c0_4] : memref<1x32xf32, #tpu.memory_space<vmem>>, vector<1x32xf32>
    %4 = vector.broadcast %3 : vector<1x32xf32> to vector<16x32xf32>
    %5 = arith.addf %2, %4 : vector<16x32xf32>
    %c0_5 = arith.constant 0 : index
    %c0_6 = arith.constant 0 : index
    %6 = vector.load %arg4[%c0_5, %c0_6] : memref<16x32xbf16, #tpu.memory_space<vmem>>, vector<16x32xbf16>
    %7 = arith.extf %6 : vector<16x32xbf16> to vector<16x32xf32>
    %8 = arith.addf %5, %7 : vector<16x32xf32>
    %c0_7 = arith.constant 0 : index
    %c0_8 = arith.constant 0 : index
    %9 = vector.load %arg5[%c0_7, %c0_8] : memref<1x32xf32, #tpu.memory_space<vmem>>, vector<1x32xf32>
    %c0_9 = arith.constant 0 : index
    %c0_10 = arith.constant 0 : index
    %10 = vector.load %arg6[%c0_9, %c0_10] : memref<1x32xf32, #tpu.memory_space<vmem>>, vector<1x32xf32>
    %cst_11 = arith.constant dense<0.000000e+00> : vector<16xf32>
    %11 = vector.multi_reduction <add>, %8, %cst_11 [1] : vector<16x32xf32> to vector<16xf32>
    %12 = vector.shape_cast %11 : vector<16xf32> to vector<16x1xf32>
    %cst_12 = arith.constant 3.200000e+01 : f32
    %13 = vector.broadcast %cst_12 : f32 to vector<16x1xf32>
    %14 = arith.divf %12, %13 : vector<16x1xf32>
    %15 = vector.broadcast %14 : vector<16x1xf32> to vector<16x32xf32>
    %16 = arith.subf %8, %15 : vector<16x32xf32>
    %17 = arith.mulf %16, %16 : vector<16x32xf32>
    %cst_13 = arith.constant dense<0.000000e+00> : vector<16xf32>
    %18 = vector.multi_reduction <add>, %17, %cst_13 [1] : vector<16x32xf32> to vector<16xf32>
    %19 = vector.shape_cast %18 : vector<16xf32> to vector<16x1xf32>
    %cst_14 = arith.constant 3.200000e+01 : f32
    %20 = vector.broadcast %cst_14 : f32 to vector<16x1xf32>
    %21 = arith.divf %19, %20 : vector<16x1xf32>
    %22 = vector.broadcast %14 : vector<16x1xf32> to vector<16x32xf32>
    %23 = arith.subf %8, %22 : vector<16x32xf32>
    %cst_15 = arith.constant 9.99999996E-13 : f32
    %24 = vector.broadcast %cst_15 : f32 to vector<16x1xf32>
    %25 = arith.addf %21, %24 : vector<16x1xf32>
    %26 = math.rsqrt %25 : vector<16x1xf32>
    %27 = vector.broadcast %26 : vector<16x1xf32> to vector<16x32xf32>
    %28 = arith.mulf %23, %27 : vector<16x32xf32>
    %29 = vector.broadcast %9 : vector<1x32xf32> to vector<16x32xf32>
    %30 = arith.mulf %28, %29 : vector<16x32xf32>
    %31 = vector.broadcast %10 : vector<1x32xf32> to vector<16x32xf32>
    %32 = arith.addf %30, %31 : vector<16x32xf32>
    %33 = arith.truncf %32 : vector<16x32xf32> to vector<16x32xbf16>
    %c0_16 = arith.constant 0 : index
    %c0_17 = arith.constant 0 : index
    %34 = vector.load %arg7[%c0_16, %c0_17] : memref<16x32xbf16, #tpu.memory_space<vmem>>, vector<16x32xbf16>
    tpu.vector_store %arg7[%c0_16, %c0_17], %33 {strides = array<i32>} : memref<16x32xbf16, #tpu.memory_space<vmem>>, vector<16x32xbf16>,
    return
  }
  func.func @transform_0(%arg0: i32) -> (i32, i32) {
    %c0_i32 = arith.constant 0 : i32
    %c0_i32_0 = arith.constant 0 : i32
    return %arg0, %c0_i32 : i32, i32
  }
  func.func @transform_1(%arg0: i32) -> (i32, i32) {
    %c0_i32 = arith.constant 0 : i32
    %c0_i32_0 = arith.constant 0 : i32
    %c0_i32_1 = arith.constant 0 : i32
    return %c0_i32, %c0_i32_0 : i32, i32
  }
  func.func @transform_2(%arg0: i32) -> (i32, i32) {
    %c0_i32 = arith.constant 0 : i32
    %c0_i32_0 = arith.constant 0 : i32
    %c0_i32_1 = arith.constant 0 : i32
    return %c0_i32, %c0_i32_0 : i32, i32
  }
  func.func @transform_3(%arg0: i32) -> (i32, i32) {
    %c0_i32 = arith.constant 0 : i32
    %c0_i32_0 = arith.constant 0 : i32
    return %arg0, %c0_i32 : i32, i32
  }
  func.func @transform_4(%arg0: i32) -> (i32, i32) {
    %c0_i32 = arith.constant 0 : i32
    %c0_i32_0 = arith.constant 0 : i32
    %c0_i32_1 = arith.constant 0 : i32
    return %c0_i32, %c0_i32_0 : i32, i32
  }
  func.func @transform_5(%arg0: i32) -> (i32, i32) {
    %c0_i32 = arith.constant 0 : i32
    %c0_i32_0 = arith.constant 0 : i32
    %c0_i32_1 = arith.constant 0 : i32
    return %c0_i32, %c0_i32_0 : i32, i32
  }
  func.func @transform_6(%arg0: i32) -> (i32, i32) {
    %c0_i32 = arith.constant 0 : i32
    %c0_i32_0 = arith.constant 0 : i32
    return %arg0, %c0_i32 : i32, i32
  }
}

module attributes {stable_mosaic.version = 11 : i64} {
  func.func @_attn_kernel(%arg0: i32, %arg1: memref<2x8x32xbf16, #tpu.memory_space<vmem>>, %arg2: memref<32x96xbf16, #tpu.memory_space<vmem>>, %arg3: memref<1x96xf32, #tpu.memory_space<vmem>>, %arg4: memref<2x8xf32, #tpu.memory_space<vmem>>, %arg5: memref<2x8x32xbf16, #tpu.memory_space<vmem>>) attributes {dimension_semantics = [#tpu.dimension_semantics<parallel>], iteration_bounds = array<i64: 1>, scalar_prefetch = 0 : i64, scratch_operands = 0 : i64, tpu.core_type = #tpu.core_type<tc>, window_params = [{transform_indices = @transform_0, window_bounds = array<i64: 2, 8, 32>}, {pipeline_mode = #tpu.pipeline_mode<synchronous>, transform_indices = @transform_1, window_bounds = array<i64: 32, 96>}, {pipeline_mode = #tpu.pipeline_mode<synchronous>, transform_indices = @transform_2, window_bounds = array<i64: 1, 96>}, {transform_indices = @transform_3, window_bounds = array<i64: 2, 8>}, {transform_indices = @transform_4, window_bounds = array<i64: 2, 8, 32>}]} {
    %c0 = arith.constant 0 : index
    %c0_0 = arith.constant 0 : index
    %c0_1 = arith.constant 0 : index
    %0 = vector.load %arg1[%c0, %c0_0, %c0_1] : memref<2x8x32xbf16, #tpu.memory_space<vmem>>, vector<2x8x32xbf16>
    %1 = vector.shape_cast %0 : vector<2x8x32xbf16> to vector<16x32xbf16>
    %c0_2 = arith.constant 0 : index
    %c0_3 = arith.constant 0 : index
    %2 = vector.load %arg2[%c0_2, %c0_3] : memref<32x96xbf16, #tpu.memory_space<vmem>>, vector<32x96xbf16>
    %cst = arith.constant dense<0.000000e+00> : vector<16x96xf32>
    %3 = tpu.matmul %1, %2, %cst {dimension_numbers = #tpu.dot_dimension_numbers<[1], [0], [0], [1], [0, 0, 1, 1], [], []>} : vector<16x32xbf16>, vector<32x96xbf16>, vector<16x96xf32> -> vector<16x96xf32>
    %c0_4 = arith.constant 0 : index
    %c0_5 = arith.constant 0 : index
    %4 = vector.load %arg3[%c0_4, %c0_5] : memref<1x96xf32, #tpu.memory_space<vmem>>, vector<1x96xf32>
    %5 = vector.broadcast %4 : vector<1x96xf32> to vector<16x96xf32>
    %6 = arith.addf %3, %5 : vector<16x96xf32>
    %7 = vector.shape_cast %6 : vector<16x96xf32> to vector<2x8x96xf32>
    %c0_6 = arith.constant 0 : index
    %c0_7 = arith.constant 0 : index
    %8 = vector.load %arg4[%c0_6, %c0_7] : memref<2x8xf32, #tpu.memory_space<vmem>>, vector<2x8xf32>
    %9 = vector.shape_cast %8 : vector<2x8xf32> to vector<2x1x8xf32>
    %10 = vector.extract_strided_slice %7 {offsets = [0, 0, 0], sizes = [2, 8, 16], strides = [1, 1, 1]} : vector<2x8x96xf32> to vector<2x8x16xf32>
    %cst_8 = arith.constant 2.500000e-01 : f32
    %11 = vector.broadcast %cst_8 : f32 to vector<2x8x16xf32>
    %12 = arith.mulf %10, %11 : vector<2x8x16xf32>
    %13 = vector.extract_strided_slice %7 {offsets = [0, 0, 32], sizes = [2, 8, 16], strides = [1, 1, 1]} : vector<2x8x96xf32> to vector<2x8x16xf32>
    %14 = vector.extract_strided_slice %7 {offsets = [0, 0, 64], sizes = [2, 8, 16], strides = [1, 1, 1]} : vector<2x8x96xf32> to vector<2x8x16xf32>
    %15 = arith.truncf %12 : vector<2x8x16xf32> to vector<2x8x16xbf16>
    %16 = arith.truncf %13 : vector<2x8x16xf32> to vector<2x8x16xbf16>
    "tpu.trace_start"() <{level = 10 : i32, message = "bqd,bkd->bqk"}> : () -> ()
    %cst_9 = arith.constant dense<0.000000e+00> : vector<2x8x8xf32>
    %17 = tpu.matmul %15, %16, %cst_9 {dimension_numbers = #tpu.dot_dimension_numbers<[2], [2], [1], [1], [0, 0, 0, 1, 1, 1], [0], [0]>} : vector<2x8x16xbf16>, vector<2x8x16xbf16>, vector<2x8x8xf32> -> vector<2x8x8xf32>
    "tpu.trace_stop"() : () -> ()
    %18 = vector.broadcast %9 : vector<2x1x8xf32> to vector<2x8x8xf32>
    %19 = arith.addf %17, %18 : vector<2x8x8xf32>
    %cst_10 = arith.constant dense<0xFF800000> : vector<2x8xf32>
    %20 = vector.multi_reduction <maximumf>, %19, %cst_10 [2] : vector<2x8x8xf32> to vector<2x8xf32>
    %21 = vector.shape_cast %20 : vector<2x8xf32> to vector<2x8x1xf32>
    %22 = vector.broadcast %21 : vector<2x8x1xf32> to vector<2x8x8xf32>
    %23 = arith.subf %19, %22 : vector<2x8x8xf32>
    %24 = math.exp %23 : vector<2x8x8xf32>
    %cst_11 = arith.constant dense<0.000000e+00> : vector<2x8xf32>
    %25 = vector.multi_reduction <add>, %24, %cst_11 [2] : vector<2x8x8xf32> to vector<2x8xf32>
    %26 = vector.shape_cast %25 : vector<2x8xf32> to vector<2x8x1xf32>
    %27 = tpu.reciprocal %26 {approx = true} : vector<2x8x1xf32> -> vector<2x8x1xf32>
    %28 = vector.broadcast %27 : vector<2x8x1xf32> to vector<2x8x8xf32>
    %29 = arith.mulf %24, %28 : vector<2x8x8xf32>
    %30 = arith.truncf %29 : vector<2x8x8xf32> to vector<2x8x8xbf16>
    %31 = arith.truncf %14 : vector<2x8x16xf32> to vector<2x8x16xbf16>
    "tpu.trace_start"() <{level = 10 : i32, message = "bqk,bkd->bqd"}> : () -> ()
    %cst_12 = arith.constant dense<0.000000e+00> : vector<2x8x16xf32>
    %32 = tpu.matmul %30, %31, %cst_12 {dimension_numbers = #tpu.dot_dimension_numbers<[2], [1], [1], [2], [0, 0, 0, 1, 1, 2], [0], [0]>} : vector<2x8x8xbf16>, vector<2x8x16xbf16>, vector<2x8x16xf32> -> vector<2x8x16xf32>
    "tpu.trace_stop"() : () -> ()
    %33 = vector.extract_strided_slice %7 {offsets = [0, 0, 16], sizes = [2, 8, 16], strides = [1, 1, 1]} : vector<2x8x96xf32> to vector<2x8x16xf32>
    %cst_13 = arith.constant 2.500000e-01 : f32
    %34 = vector.broadcast %cst_13 : f32 to vector<2x8x16xf32>
    %35 = arith.mulf %33, %34 : vector<2x8x16xf32>
    %36 = vector.extract_strided_slice %7 {offsets = [0, 0, 48], sizes = [2, 8, 16], strides = [1, 1, 1]} : vector<2x8x96xf32> to vector<2x8x16xf32>
    %37 = vector.extract_strided_slice %7 {offsets = [0, 0, 80], sizes = [2, 8, 16], strides = [1, 1, 1]} : vector<2x8x96xf32> to vector<2x8x16xf32>
    %38 = arith.truncf %35 : vector<2x8x16xf32> to vector<2x8x16xbf16>
    %39 = arith.truncf %36 : vector<2x8x16xf32> to vector<2x8x16xbf16>
    "tpu.trace_start"() <{level = 10 : i32, message = "bqd,bkd->bqk"}> : () -> ()
    %cst_14 = arith.constant dense<0.000000e+00> : vector<2x8x8xf32>
    %40 = tpu.matmul %38, %39, %cst_14 {dimension_numbers = #tpu.dot_dimension_numbers<[2], [2], [1], [1], [0, 0, 0, 1, 1, 1], [0], [0]>} : vector<2x8x16xbf16>, vector<2x8x16xbf16>, vector<2x8x8xf32> -> vector<2x8x8xf32>
    "tpu.trace_stop"() : () -> ()
    %41 = vector.broadcast %9 : vector<2x1x8xf32> to vector<2x8x8xf32>
    %42 = arith.addf %40, %41 : vector<2x8x8xf32>
    %cst_15 = arith.constant dense<0xFF800000> : vector<2x8xf32>
    %43 = vector.multi_reduction <maximumf>, %42, %cst_15 [2] : vector<2x8x8xf32> to vector<2x8xf32>
    %44 = vector.shape_cast %43 : vector<2x8xf32> to vector<2x8x1xf32>
    %45 = vector.broadcast %44 : vector<2x8x1xf32> to vector<2x8x8xf32>
    %46 = arith.subf %42, %45 : vector<2x8x8xf32>
    %47 = math.exp %46 : vector<2x8x8xf32>
    %cst_16 = arith.constant dense<0.000000e+00> : vector<2x8xf32>
    %48 = vector.multi_reduction <add>, %47, %cst_16 [2] : vector<2x8x8xf32> to vector<2x8xf32>
    %49 = vector.shape_cast %48 : vector<2x8xf32> to vector<2x8x1xf32>
    %50 = tpu.reciprocal %49 {approx = true} : vector<2x8x1xf32> -> vector<2x8x1xf32>
    %51 = vector.broadcast %50 : vector<2x8x1xf32> to vector<2x8x8xf32>
    %52 = arith.mulf %47, %51 : vector<2x8x8xf32>
    %53 = arith.truncf %52 : vector<2x8x8xf32> to vector<2x8x8xbf16>
    %54 = arith.truncf %37 : vector<2x8x16xf32> to vector<2x8x16xbf16>
    "tpu.trace_start"() <{level = 10 : i32, message = "bqk,bkd->bqd"}> : () -> ()
    %cst_17 = arith.constant dense<0.000000e+00> : vector<2x8x16xf32>
    %55 = tpu.matmul %53, %54, %cst_17 {dimension_numbers = #tpu.dot_dimension_numbers<[2], [1], [1], [2], [0, 0, 0, 1, 1, 2], [0], [0]>} : vector<2x8x8xbf16>, vector<2x8x16xbf16>, vector<2x8x16xf32> -> vector<2x8x16xf32>
    "tpu.trace_stop"() : () -> ()
    %56 = tpu.concatenate %32, %55 in 2 : vector<2x8x16xf32>, vector<2x8x16xf32> -> vector<2x8x32xf32>
    %57 = arith.truncf %56 : vector<2x8x32xf32> to vector<2x8x32xbf16>
    %c0_18 = arith.constant 0 : index
    %c0_19 = arith.constant 0 : index
    %c0_20 = arith.constant 0 : index
    %58 = vector.load %arg5[%c0_18, %c0_19, %c0_20] : memref<2x8x32xbf16, #tpu.memory_space<vmem>>, vector<2x8x32xbf16>
    tpu.vector_store %arg5[%c0_18, %c0_19, %c0_20], %57 {strides = array<i32>} : memref<2x8x32xbf16, #tpu.memory_space<vmem>>, vector<2x8x32xbf16>,
    return
  }
  func.func @transform_0(%arg0: i32) -> (i32, i32, i32) {
    %c0_i32 = arith.constant 0 : i32
    %c0_i32_0 = arith.constant 0 : i32
    %c0_i32_1 = arith.constant 0 : i32
    return %arg0, %c0_i32, %c0_i32_0 : i32, i32, i32
  }
  func.func @transform_1(%arg0: i32) -> (i32, i32) {
    %c0_i32 = arith.constant 0 : i32
    %c0_i32_0 = arith.constant 0 : i32
    %c0_i32_1 = arith.constant 0 : i32
    return %c0_i32, %c0_i32_0 : i32, i32
  }
  func.func @transform_2(%arg0: i32) -> (i32, i32) {
    %c0_i32 = arith.constant 0 : i32
    %c0_i32_0 = arith.constant 0 : i32
    %c0_i32_1 = arith.constant 0 : i32
    return %c0_i32, %c0_i32_0 : i32, i32
  }
  func.func @transform_3(%arg0: i32) -> (i32, i32) {
    %c0_i32 = arith.constant 0 : i32
    %c0_i32_0 = arith.constant 0 : i32
    return %arg0, %c0_i32 : i32, i32
  }
  func.func @transform_4(%arg0: i32) -> (i32, i32, i32) {
    %c0_i32 = arith.constant 0 : i32
    %c0_i32_0 = arith.constant 0 : i32
    %c0_i32_1 = arith.constant 0 : i32
    return %arg0, %c0_i32, %c0_i32_0 : i32, i32, i32
  }
}

module attributes {stable_mosaic.version = 11 : i64} {
  func.func @_linear_kernel(%arg0: i32, %arg1: memref<16x32xbf16, #tpu.memory_space<vmem>>, %arg2: memref<32x64xbf16, #tpu.memory_space<vmem>>, %arg3: memref<1x64xf32, #tpu.memory_space<vmem>>, %arg4: memref<16x64xbf16, #tpu.memory_space<vmem>>) attributes {dimension_semantics = [#tpu.dimension_semantics<parallel>], iteration_bounds = array<i64: 1>, scalar_prefetch = 0 : i64, scratch_operands = 0 : i64, tpu.core_type = #tpu.core_type<tc>, window_params = [{transform_indices = @transform_0, window_bounds = array<i64: 16, 32>}, {pipeline_mode = #tpu.pipeline_mode<synchronous>, transform_indices = @transform_1, window_bounds = array<i64: 32, 64>}, {pipeline_mode = #tpu.pipeline_mode<synchronous>, transform_indices = @transform_2, window_bounds = array<i64: 1, 64>}, {transform_indices = @transform_3, window_bounds = array<i64: 16, 64>}]} {
    %c0 = arith.constant 0 : index
    %c0_0 = arith.constant 0 : index
    %0 = vector.load %arg1[%c0, %c0_0] : memref<16x32xbf16, #tpu.memory_space<vmem>>, vector<16x32xbf16>
    %c0_1 = arith.constant 0 : index
    %c0_2 = arith.constant 0 : index
    %1 = vector.load %arg2[%c0_1, %c0_2] : memref<32x64xbf16, #tpu.memory_space<vmem>>, vector<32x64xbf16>
    %cst = arith.constant dense<0.000000e+00> : vector<16x64xf32>
    %2 = tpu.matmul %0, %1, %cst {dimension_numbers = #tpu.dot_dimension_numbers<[1], [0], [0], [1], [0, 0, 1, 1], [], []>} : vector<16x32xbf16>, vector<32x64xbf16>, vector<16x64xf32> -> vector<16x64xf32>
    %c0_3 = arith.constant 0 : index
    %c0_4 = arith.constant 0 : index
    %3 = vector.load %arg3[%c0_3, %c0_4] : memref<1x64xf32, #tpu.memory_space<vmem>>, vector<1x64xf32>
    %4 = vector.broadcast %3 : vector<1x64xf32> to vector<16x64xf32>
    %5 = arith.addf %2, %4 : vector<16x64xf32>
    %6 = arith.mulf %5, %5 : vector<16x64xf32>
    %7 = arith.mulf %5, %6 : vector<16x64xf32>
    %cst_5 = arith.constant 4.471500e-02 : f32
    %8 = vector.broadcast %cst_5 : f32 to vector<16x64xf32>
    %9 = arith.mulf %8, %7 : vector<16x64xf32>
    %10 = arith.addf %5, %9 : vector<16x64xf32>
    %cst_6 = arith.constant 0.797884583 : f32
    %11 = vector.broadcast %cst_6 : f32 to vector<16x64xf32>
    %12 = arith.mulf %11, %10 : vector<16x64xf32>
    %13 = math.tanh %12 : vector<16x64xf32>
    %cst_7 = arith.constant 1.000000e+00 : f32
    %14 = vector.broadcast %cst_7 : f32 to vector<16x64xf32>
    %15 = arith.addf %14, %13 : vector<16x64xf32>
    %cst_8 = arith.constant 5.000000e-01 : f32
    %16 = vector.broadcast %cst_8 : f32 to vector<16x64xf32>
    %17 = arith.mulf %16, %15 : vector<16x64xf32>
    %18 = arith.mulf %5, %17 : vector<16x64xf32>
    %19 = arith.truncf %18 : vector<16x64xf32> to vector<16x64xbf16>
    %c0_9 = arith.constant 0 : index
    %c0_10 = arith.constant 0 : index
    %20 = vector.load %arg4[%c0_9, %c0_10] : memref<16x64xbf16, #tpu.memory_space<vmem>>, vector<16x64xbf16>
    tpu.vector_store %arg4[%c0_9, %c0_10], %19 {strides = array<i32>} : memref<16x64xbf16, #tpu.memory_space<vmem>>, vector<16x64xbf16>,
    return
  }
  func.func @transform_0(%arg0: i32) -> (i32, i32) {
    %c0_i32 = arith.constant 0 : i32
    %c0_i32_0 = arith.constant 0 : i32
    return %arg0, %c0_i32 : i32, i32
  }
  func.func @transform_1(%arg0: i32) -> (i32, i32) {
    %c0_i32 = arith.constant 0 : i32
    %c0_i32_0 = arith.constant 0 : i32
    %c0_i32_1 = arith.constant 0 : i32
    return %c0_i32, %c0_i32_0 : i32, i32
  }
  func.func @transform_2(%arg0: i32) -> (i32, i32) {
    %c0_i32 = arith.constant 0 : i32
    %c0_i32_0 = arith.constant 0 : i32
    %c0_i32_1 = arith.constant 0 : i32
    return %c0_i32, %c0_i32_0 : i32, i32
  }
  func.func @transform_3(%arg0: i32) -> (i32, i32) {
    %c0_i32 = arith.constant 0 : i32
    %c0_i32_0 = arith.constant 0 : i32
    return %arg0, %c0_i32 : i32, i32
  }
}

module attributes {stable_mosaic.version = 11 : i64} {
  func.func @_linear_kernel(%arg0: i32, %arg1: memref<16x64xbf16, #tpu.memory_space<vmem>>, %arg2: memref<64x32xbf16, #tpu.memory_space<vmem>>, %arg3: memref<1x32xf32, #tpu.memory_space<vmem>>, %arg4: memref<16x32xbf16, #tpu.memory_space<vmem>>, %arg5: memref<1x32xf32, #tpu.memory_space<vmem>>, %arg6: memref<1x32xf32, #tpu.memory_space<vmem>>, %arg7: memref<16x32xbf16, #tpu.memory_space<vmem>>) attributes {dimension_semantics = [#tpu.dimension_semantics<parallel>], iteration_bounds = array<i64: 1>, scalar_prefetch = 0 : i64, scratch_operands = 0 : i64, tpu.core_type = #tpu.core_type<tc>, window_params = [{transform_indices = @transform_0, window_bounds = array<i64: 16, 64>}, {pipeline_mode = #tpu.pipeline_mode<synchronous>, transform_indices = @transform_1, window_bounds = array<i64: 64, 32>}, {pipeline_mode = #tpu.pipeline_mode<synchronous>, transform_indices = @transform_2, window_bounds = array<i64: 1, 32>}, {transform_indices = @transform_3, window_bounds = array<i64: 16, 32>}, {pipeline_mode = #tpu.pipeline_mode<synchronous>, transform_indices = @transform_4, window_bounds = array<i64: 1, 32>}, {pipeline_mode = #tpu.pipeline_mode<synchronous>, transform_indices = @transform_5, window_bounds = array<i64: 1, 32>}, {transform_indices = @transform_6, window_bounds = array<i64: 16, 32>}]} {
    %c0 = arith.constant 0 : index
    %c0_0 = arith.constant 0 : index
    %0 = vector.load %arg1[%c0, %c0_0] : memref<16x64xbf16, #tpu.memory_space<vmem>>, vector<16x64xbf16>
    %c0_1 = arith.constant 0 : index
    %c0_2 = arith.constant 0 : index
    %1 = vector.load %arg2[%c0_1, %c0_2] : memref<64x32xbf16, #tpu.memory_space<vmem>>, vector<64x32xbf16>
    %cst = arith.constant dense<0.000000e+00> : vector<16x32xf32>
    %2 = tpu.matmul %0, %1, %cst {dimension_numbers = #tpu.dot_dimension_numbers<[1], [0], [0], [1], [0, 0, 1, 1], [], []>} : vector<16x64xbf16>, vector<64x32xbf16>, vector<16x32xf32> -> vector<16x32xf32>
    %c0_3 = arith.constant 0 : index
    %c0_4 = arith.constant 0 : index
    %3 = vector.load %arg3[%c0_3, %c0_4] : memref<1x32xf32, #tpu.memory_space<vmem>>, vector<1x32xf32>
    %4 = vector.broadcast %3 : vector<1x32xf32> to vector<16x32xf32>
    %5 = arith.addf %2, %4 : vector<16x32xf32>
    %c0_5 = arith.constant 0 : index
    %c0_6 = arith.constant 0 : index
    %6 = vector.load %arg4[%c0_5, %c0_6] : memref<16x32xbf16, #tpu.memory_space<vmem>>, vector<16x32xbf16>
    %7 = arith.extf %6 : vector<16x32xbf16> to vector<16x32xf32>
    %8 = arith.addf %5, %7 : vector<16x32xf32>
    %c0_7 = arith.constant 0 : index
    %c0_8 = arith.constant 0 : index
    %9 = vector.load %arg5[%c0_7, %c0_8] : memref<1x32xf32, #tpu.memory_space<vmem>>, vector<1x32xf32>
    %c0_9 = arith.constant 0 : index
    %c0_10 = arith.constant 0 : index
    %10 = vector.load %arg6[%c0_9, %c0_10] : memref<1x32xf32, #tpu.memory_space<vmem>>, vector<1x32xf32>
    %cst_11 = arith.constant dense<0.000000e+00> : vector<16xf32>
    %11 = vector.multi_reduction <add>, %8, %cst_11 [1] : vector<16x32xf32> to vector<16xf32>
    %12 = vector.shape_cast %11 : vector<16xf32> to vector<16x1xf32>
    %cst_12 = arith.constant 3.200000e+01 : f32
    %13 = vector.broadcast %cst_12 : f32 to vector<16x1xf32>
    %14 = arith.divf %12, %13 : vector<16x1xf32>
    %15 = vector.broadcast %14 : vector<16x1xf32> to vector<16x32xf32>
    %16 = arith.subf %8, %15 : vector<16x32xf32>
    %17 = arith.mulf %16, %16 : vector<16x32xf32>
    %cst_13 = arith.constant dense<0.000000e+00> : vector<16xf32>
    %18 = vector.multi_reduction <add>, %17, %cst_13 [1] : vector<16x32xf32> to vector<16xf32>
    %19 = vector.shape_cast %18 : vector<16xf32> to vector<16x1xf32>
    %cst_14 = arith.constant 3.200000e+01 : f32
    %20 = vector.broadcast %cst_14 : f32 to vector<16x1xf32>
    %21 = arith.divf %19, %20 : vector<16x1xf32>
    %22 = vector.broadcast %14 : vector<16x1xf32> to vector<16x32xf32>
    %23 = arith.subf %8, %22 : vector<16x32xf32>
    %cst_15 = arith.constant 9.99999996E-13 : f32
    %24 = vector.broadcast %cst_15 : f32 to vector<16x1xf32>
    %25 = arith.addf %21, %24 : vector<16x1xf32>
    %26 = math.rsqrt %25 : vector<16x1xf32>
    %27 = vector.broadcast %26 : vector<16x1xf32> to vector<16x32xf32>
    %28 = arith.mulf %23, %27 : vector<16x32xf32>
    %29 = vector.broadcast %9 : vector<1x32xf32> to vector<16x32xf32>
    %30 = arith.mulf %28, %29 : vector<16x32xf32>
    %31 = vector.broadcast %10 : vector<1x32xf32> to vector<16x32xf32>
    %32 = arith.addf %30, %31 : vector<16x32xf32>
    %33 = arith.truncf %32 : vector<16x32xf32> to vector<16x32xbf16>
    %c0_16 = arith.constant 0 : index
    %c0_17 = arith.constant 0 : index
    %34 = vector.load %arg7[%c0_16, %c0_17] : memref<16x32xbf16, #tpu.memory_space<vmem>>, vector<16x32xbf16>
    tpu.vector_store %arg7[%c0_16, %c0_17], %33 {strides = array<i32>} : memref<16x32xbf16, #tpu.memory_space<vmem>>, vector<16x32xbf16>,
    return
  }
  func.func @transform_0(%arg0: i32) -> (i32, i32) {
    %c0_i32 = arith.constant 0 : i32
    %c0_i32_0 = arith.constant 0 : i32
    return %arg0, %c0_i32 : i32, i32
  }
  func.func @transform_1(%arg0: i32) -> (i32, i32) {
    %c0_i32 = arith.constant 0 : i32
    %c0_i32_0 = arith.constant 0 : i32
    %c0_i32_1 = arith.constant 0 : i32
    return %c0_i32, %c0_i32_0 : i32, i32
  }
  func.func @transform_2(%arg0: i32) -> (i32, i32) {
    %c0_i32 = arith.constant 0 : i32
    %c0_i32_0 = arith.constant 0 : i32
    %c0_i32_1 = arith.constant 0 : i32
    return %c0_i32, %c0_i32_0 : i32, i32
  }
  func.func @transform_3(%arg0: i32) -> (i32, i32) {
    %c0_i32 = arith.constant 0 : i32
    %c0_i32_0 = arith.constant 0 : i32
    return %arg0, %c0_i32 : i32, i32
  }
  func.func @transform_4(%arg0: i32) -> (i32, i32) {
    %c0_i32 = arith.constant 0 : i32
    %c0_i32_0 = arith.constant 0 : i32
    %c0_i32_1 = arith.constant 0 : i32
    return %c0_i32, %c0_i32_0 : i32, i32
  }
  func.func @transform_5(%arg0: i32) -> (i32, i32) {
    %c0_i32 = arith.constant 0 : i32
    %c0_i32_0 = arith.constant 0 : i32
    %c0_i32_1 = arith.constant 0 : i32
    return %c0_i32, %c0_i32_0 : i32, i32
  }
  func.func @transform_6(%arg0: i32) -> (i32, i32) {
    %c0_i32 = arith.constant 0 : i32
    %c0_i32_0 = arith.constant 0 : i32
    return %arg0, %c0_i32 : i32, i32
  }
}

module attributes {stable_mosaic.version = 11 : i64} {
  func.func @_linear_kernel(%arg0: i32, %arg1: memref<16x32xbf16, #tpu.memory_space<vmem>>, %arg2: memref<32x32xbf16, #tpu.memory_space<vmem>>, %arg3: memref<1x32xf32, #tpu.memory_space<vmem>>, %arg4: memref<1x32xf32, #tpu.memory_space<vmem>>, %arg5: memref<1x32xf32, #tpu.memory_space<vmem>>, %arg6: memref<16x32xbf16, #tpu.memory_space<vmem>>) attributes {dimension_semantics = [#tpu.dimension_semantics<parallel>], iteration_bounds = array<i64: 1>, scalar_prefetch = 0 : i64, scratch_operands = 0 : i64, tpu.core_type = #tpu.core_type<tc>, window_params = [{transform_indices = @transform_0, window_bounds = array<i64: 16, 32>}, {pipeline_mode = #tpu.pipeline_mode<synchronous>, transform_indices = @transform_1, window_bounds = array<i64: 32, 32>}, {pipeline_mode = #tpu.pipeline_mode<synchronous>, transform_indices = @transform_2, window_bounds = array<i64: 1, 32>}, {pipeline_mode = #tpu.pipeline_mode<synchronous>, transform_indices = @transform_3, window_bounds = array<i64: 1, 32>}, {pipeline_mode = #tpu.pipeline_mode<synchronous>, transform_indices = @transform_4, window_bounds = array<i64: 1, 32>}, {transform_indices = @transform_5, window_bounds = array<i64: 16, 32>}]} {
    %c0 = arith.constant 0 : index
    %c0_0 = arith.constant 0 : index
    %0 = vector.load %arg1[%c0, %c0_0] : memref<16x32xbf16, #tpu.memory_space<vmem>>, vector<16x32xbf16>
    %c0_1 = arith.constant 0 : index
    %c0_2 = arith.constant 0 : index
    %1 = vector.load %arg2[%c0_1, %c0_2] : memref<32x32xbf16, #tpu.memory_space<vmem>>, vector<32x32xbf16>
    %cst = arith.constant dense<0.000000e+00> : vector<16x32xf32>
    %2 = tpu.matmul %0, %1, %cst {dimension_numbers = #tpu.dot_dimension_numbers<[1], [0], [0], [1], [0, 0, 1, 1], [], []>} : vector<16x32xbf16>, vector<32x32xbf16>, vector<16x32xf32> -> vector<16x32xf32>
    %c0_3 = arith.constant 0 : index
    %c0_4 = arith.constant 0 : index
    %3 = vector.load %arg3[%c0_3, %c0_4] : memref<1x32xf32, #tpu.memory_space<vmem>>, vector<1x32xf32>
    %4 = vector.broadcast %3 : vector<1x32xf32> to vector<16x32xf32>
    %5 = arith.addf %2, %4 : vector<16x32xf32>
    %6 = arith.mulf %5, %5 : vector<16x32xf32>
    %7 = arith.mulf %5, %6 : vector<16x32xf32>
    %cst_5 = arith.constant 4.471500e-02 : f32
    %8 = vector.broadcast %cst_5 : f32 to vector<16x32xf32>
    %9 = arith.mulf %8, %7 : vector<16x32xf32>
    %10 = arith.addf %5, %9 : vector<16x32xf32>
    %cst_6 = arith.constant 0.797884583 : f32
    %11 = vector.broadcast %cst_6 : f32 to vector<16x32xf32>
    %12 = arith.mulf %11, %10 : vector<16x32xf32>
    %13 = math.tanh %12 : vector<16x32xf32>
    %cst_7 = arith.constant 1.000000e+00 : f32
    %14 = vector.broadcast %cst_7 : f32 to vector<16x32xf32>
    %15 = arith.addf %14, %13 : vector<16x32xf32>
    %cst_8 = arith.constant 5.000000e-01 : f32
    %16 = vector.broadcast %cst_8 : f32 to vector<16x32xf32>
    %17 = arith.mulf %16, %15 : vector<16x32xf32>
    %18 = arith.mulf %5, %17 : vector<16x32xf32>
    %c0_9 = arith.constant 0 : index
    %c0_10 = arith.constant 0 : index
    %19 = vector.load %arg4[%c0_9, %c0_10] : memref<1x32xf32, #tpu.memory_space<vmem>>, vector<1x32xf32>
    %c0_11 = arith.constant 0 : index
    %c0_12 = arith.constant 0 : index
    %20 = vector.load %arg5[%c0_11, %c0_12] : memref<1x32xf32, #tpu.memory_space<vmem>>, vector<1x32xf32>
    %cst_13 = arith.constant dense<0.000000e+00> : vector<16xf32>
    %21 = vector.multi_reduction <add>, %18, %cst_13 [1] : vector<16x32xf32> to vector<16xf32>
    %22 = vector.shape_cast %21 : vector<16xf32> to vector<16x1xf32>
    %cst_14 = arith.constant 3.200000e+01 : f32
    %23 = vector.broadcast %cst_14 : f32 to vector<16x1xf32>
    %24 = arith.divf %22, %23 : vector<16x1xf32>
    %25 = vector.broadcast %24 : vector<16x1xf32> to vector<16x32xf32>
    %26 = arith.subf %18, %25 : vector<16x32xf32>
    %27 = arith.mulf %26, %26 : vector<16x32xf32>
    %cst_15 = arith.constant dense<0.000000e+00> : vector<16xf32>
    %28 = vector.multi_reduction <add>, %27, %cst_15 [1] : vector<16x32xf32> to vector<16xf32>
    %29 = vector.shape_cast %28 : vector<16xf32> to vector<16x1xf32>
    %cst_16 = arith.constant 3.200000e+01 : f32
    %30 = vector.broadcast %cst_16 : f32 to vector<16x1xf32>
    %31 = arith.divf %29, %30 : vector<16x1xf32>
    %32 = vector.broadcast %24 : vector<16x1xf32> to vector<16x32xf32>
    %33 = arith.subf %18, %32 : vector<16x32xf32>
    %cst_17 = arith.constant 9.99999996E-13 : f32
    %34 = vector.broadcast %cst_17 : f32 to vector<16x1xf32>
    %35 = arith.addf %31, %34 : vector<16x1xf32>
    %36 = math.rsqrt %35 : vector<16x1xf32>
    %37 = vector.broadcast %36 : vector<16x1xf32> to vector<16x32xf32>
    %38 = arith.mulf %33, %37 : vector<16x32xf32>
    %39 = vector.broadcast %19 : vector<1x32xf32> to vector<16x32xf32>
    %40 = arith.mulf %38, %39 : vector<16x32xf32>
    %41 = vector.broadcast %20 : vector<1x32xf32> to vector<16x32xf32>
    %42 = arith.addf %40, %41 : vector<16x32xf32>
    %43 = arith.truncf %42 : vector<16x32xf32> to vector<16x32xbf16>
    %c0_18 = arith.constant 0 : index
    %c0_19 = arith.constant 0 : index
    %44 = vector.load %arg6[%c0_18, %c0_19] : memref<16x32xbf16, #tpu.memory_space<vmem>>, vector<16x32xbf16>
    tpu.vector_store %arg6[%c0_18, %c0_19], %43 {strides = array<i32>} : memref<16x32xbf16, #tpu.memory_space<vmem>>, vector<16x32xbf16>,
    return
  }
  func.func @transform_0(%arg0: i32) -> (i32, i32) {
    %c0_i32 = arith.constant 0 : i32
    %c0_i32_0 = arith.constant 0 : i32
    return %arg0, %c0_i32 : i32, i32
  }
  func.func @transform_1(%arg0: i32) -> (i32, i32) {
    %c0_i32 = arith.constant 0 : i32
    %c0_i32_0 = arith.constant 0 : i32
    %c0_i32_1 = arith.constant 0 : i32
    return %c0_i32, %c0_i32_0 : i32, i32
  }
  func.func @transform_2(%arg0: i32) -> (i32, i32) {
    %c0_i32 = arith.constant 0 : i32
    %c0_i32_0 = arith.constant 0 : i32
    %c0_i32_1 = arith.constant 0 : i32
    return %c0_i32, %c0_i32_0 : i32, i32
  }
  func.func @transform_3(%arg0: i32) -> (i32, i32) {
    %c0_i32 = arith.constant 0 : i32
    %c0_i32_0 = arith.constant 0 : i32
    %c0_i32_1 = arith.constant 0 : i32
    return %c0_i32, %c0_i32_0 : i32, i32
  }
  func.func @transform_4(%arg0: i32) -> (i32, i32) {
    %c0_i32 = arith.constant 0 : i32
    %c0_i32_0 = arith.constant 0 : i32
    %c0_i32_1 = arith.constant 0 : i32
    return %c0_i32, %c0_i32_0 : i32, i32
  }
  func.func @transform_5(%arg0: i32) -> (i32, i32) {
    %c0_i32 = arith.constant 0 : i32
    %c0_i32_0 = arith.constant 0 : i32
    return %arg0, %c0_i32 : i32, i32
  }
}

module attributes {stable_mosaic.version = 11 : i64} {
  func.func @_decoder_ce_kernel(%arg0: i32, %arg1: i32, %arg2: memref<16x32xbf16, #tpu.memory_space<vmem>>, %arg3: memref<32x128xbf16, #tpu.memory_space<vmem>>, %arg4: memref<1x128xf32, #tpu.memory_space<vmem>>, %arg5: memref<16x1xi32, #tpu.memory_space<vmem>>, %arg6: memref<1x1xf32, #tpu.memory_space<vmem>>, %arg7: memref<16x3xf32, #tpu.memory_space<vmem>>) attributes {dimension_semantics = [#tpu.dimension_semantics<parallel>, #tpu.dimension_semantics<arbitrary>], iteration_bounds = array<i64: 1, 1>, scalar_prefetch = 0 : i64, scratch_operands = 1 : i64, tpu.core_type = #tpu.core_type<tc>, window_params = [{transform_indices = @transform_0, window_bounds = array<i64: 16, 32>}, {transform_indices = @transform_1, window_bounds = array<i64: 32, 128>}, {transform_indices = @transform_2, window_bounds = array<i64: 1, 128>}, {transform_indices = @transform_3, window_bounds = array<i64: 16, 1>}, {transform_indices = @transform_4, window_bounds = array<i64: 1, 1>}]} {
    %c0_i32 = arith.constant 0 : i32
    %0 = arith.cmpi eq, %arg1, %c0_i32 : i32
    %1 = arith.extui %0 : i1 to i32
    %c0_i32_0 = arith.constant 0 : i32
    %2 = arith.cmpi ne, %1, %c0_i32_0 : i32
    scf.if %2 {
      %42 = tpu.iota {dimensions = array<i32: 1>} : vector<16x3xi32>
      %c0_i32_18 = arith.constant 0 : i32
      %43 = vector.broadcast %c0_i32_18 : i32 to vector<16x3xi32>
      %44 = arith.cmpi eq, %42, %43 : vector<16x3xi32>
      %cst_19 = arith.constant -1.000000e+30 : f32
      %cst_20 = arith.constant 0.000000e+00 : f32
      %45 = vector.broadcast %cst_19 : f32 to vector<16x3xf32>
      %46 = vector.broadcast %cst_20 : f32 to vector<16x3xf32>
      %47 = arith.select %44, %45, %46 : vector<16x3xi1>, vector<16x3xf32>
      %c0_21 = arith.constant 0 : index
      %c0_22 = arith.constant 0 : index
      %48 = vector.load %arg7[%c0_21, %c0_22] : memref<16x3xf32, #tpu.memory_space<vmem>>, vector<16x3xf32>
      tpu.vector_store %arg7[%c0_21, %c0_22], %47 {strides = array<i32>} : memref<16x3xf32, #tpu.memory_space<vmem>>, vector<16x3xf32>,
    } else {
    }
    %c0 = arith.constant 0 : index
    %c0_1 = arith.constant 0 : index
    %3 = vector.load %arg2[%c0, %c0_1] : memref<16x32xbf16, #tpu.memory_space<vmem>>, vector<16x32xbf16>
    %c0_2 = arith.constant 0 : index
    %c0_3 = arith.constant 0 : index
    %4 = vector.load %arg3[%c0_2, %c0_3] : memref<32x128xbf16, #tpu.memory_space<vmem>>, vector<32x128xbf16>
    %cst = arith.constant dense<0.000000e+00> : vector<16x128xf32>
    %5 = tpu.matmul %3, %4, %cst {dimension_numbers = #tpu.dot_dimension_numbers<[1], [0], [0], [1], [0, 0, 1, 1], [], []>} : vector<16x32xbf16>, vector<32x128xbf16>, vector<16x128xf32> -> vector<16x128xf32>
    %c0_4 = arith.constant 0 : index
    %c0_5 = arith.constant 0 : index
    %6 = vector.load %arg4[%c0_4, %c0_5] : memref<1x128xf32, #tpu.memory_space<vmem>>, vector<1x128xf32>
    %7 = vector.broadcast %6 : vector<1x128xf32> to vector<16x128xf32>
    %8 = arith.addf %5, %7 : vector<16x128xf32>
    %c0_6 = arith.constant 0 : index
    %c0_7 = arith.constant 0 : index
    %9 = vector.load %arg5[%c0_6, %c0_7] : memref<16x1xi32, #tpu.memory_space<vmem>>, vector<16x1xi32>
    %c0_8 = arith.constant 0 : index
    %c0_9 = arith.constant 0 : index
    %10 = vector.load %arg7[%c0_8, %c0_9] : memref<16x3xf32, #tpu.memory_space<vmem>>, vector<16x3xf32>
    %11 = vector.extract_strided_slice %10 {offsets = [0, 0], sizes = [16, 1], strides = [1, 1]} : vector<16x3xf32> to vector<16x1xf32>
    %12 = vector.extract_strided_slice %10 {offsets = [0, 1], sizes = [16, 1], strides = [1, 1]} : vector<16x3xf32> to vector<16x1xf32>
    %13 = vector.extract_strided_slice %10 {offsets = [0, 2], sizes = [16, 1], strides = [1, 1]} : vector<16x3xf32> to vector<16x1xf32>
    %14 = tpu.iota {dimensions = array<i32: 1>} : vector<16x128xi32>
    %c128_i32 = arith.constant 128 : i32
    %15 = arith.muli %arg1, %c128_i32 : i32
    %16 = vector.broadcast %15 : i32 to vector<16x128xi32>
    %17 = arith.addi %14, %16 : vector<16x128xi32>
    %18 = vector.broadcast %9 : vector<16x1xi32> to vector<16x128xi32>
    %19 = arith.cmpi eq, %17, %18 : vector<16x128xi32>
    %cst_10 = arith.constant 0.000000e+00 : f32
    %20 = vector.broadcast %cst_10 : f32 to vector<16x128xf32>
    %21 = arith.select %19, %8, %20 : vector<16x128xi1>, vector<16x128xf32>
    %cst_11 = arith.constant dense<0.000000e+00> : vector<16xf32>
    %22 = vector.multi_reduction <add>, %21, %cst_11 [1] : vector<16x128xf32> to vector<16xf32>
    %23 = vector.shape_cast %22 : vector<16xf32> to vector<16x1xf32>
    %24 = arith.addf %13, %23 : vector<16x1xf32>
    %cst_12 = arith.constant dense<0xFF800000> : vector<16xf32>
    %25 = vector.multi_reduction <maximumf>, %8, %cst_12 [1] : vector<16x128xf32> to vector<16xf32>
    %26 = vector.shape_cast %25 : vector<16xf32> to vector<16x1xf32>
    %27 = arith.maximumf %11, %26 : vector<16x1xf32>
    %28 = arith.subf %11, %27 : vector<16x1xf32>
    %29 = math.exp %28 : vector<16x1xf32>
    %30 = arith.mulf %12, %29 : vector<16x1xf32>
    %31 = vector.broadcast %27 : vector<16x1xf32> to vector<16x128xf32>
    %32 = arith.subf %8, %31 : vector<16x128xf32>
    %33 = math.exp %32 : vector<16x128xf32>
    %cst_13 = arith.constant dense<0.000000e+00> : vector<16xf32>
    %34 = vector.multi_reduction <add>, %33, %cst_13 [1] : vector<16x128xf32> to vector<16xf32>
    %35 = vector.shape_cast %34 : vector<16xf32> to vector<16x1xf32>
    %36 = arith.addf %30, %35 : vector<16x1xf32>
    %37 = tpu.concatenate %27, %36, %24 in 1 : vector<16x1xf32>, vector<16x1xf32>, vector<16x1xf32> -> vector<16x3xf32>
    %c0_14 = arith.constant 0 : index
    %c0_15 = arith.constant 0 : index
    %38 = vector.load %arg7[%c0_14, %c0_15] : memref<16x3xf32, #tpu.memory_space<vmem>>, vector<16x3xf32>
    tpu.vector_store %arg7[%c0_14, %c0_15], %37 {strides = array<i32>} : memref<16x3xf32, #tpu.memory_space<vmem>>, vector<16x3xf32>,
    %c0_i32_16 = arith.constant 0 : i32
    %39 = arith.cmpi eq, %arg1, %c0_i32_16 : i32
    %40 = arith.extui %39 : i1 to i32
    %c0_i32_17 = arith.constant 0 : i32
    %41 = arith.cmpi ne, %40, %c0_i32_17 : i32
    scf.if %41 {
      %42 = math.log %36 : vector<16x1xf32>
      %43 = arith.addf %27, %42 : vector<16x1xf32>
      %c-100_i32 = arith.constant -100 : i32
      %44 = vector.broadcast %c-100_i32 : i32 to vector<16x1xi32>
      %45 = arith.cmpi ne, %9, %44 : vector<16x1xi32>
      %46 = arith.subf %43, %24 : vector<16x1xf32>
      %cst_18 = arith.constant 0.000000e+00 : f32
      %47 = vector.broadcast %cst_18 : f32 to vector<16x1xf32>
      %48 = arith.select %45, %46, %47 : vector<16x1xi1>, vector<16x1xf32>
      %49 = vector.shape_cast %48 : vector<16x1xf32> to vector<1x16x1xf32>
      %cst_19 = arith.constant dense<0.000000e+00> : vector<1xf32>
      %50 = vector.multi_reduction <add>, %49, %cst_19 [1, 2] : vector<1x16x1xf32> to vector<1xf32>
      %51 = vector.shape_cast %50 : vector<1xf32> to vector<1x1x1xf32>
      %52 = vector.extract %51[0, 0, 0] : f32 from vector<1x1x1xf32>
      %53 = vector.broadcast %52 : f32 to vector<1x1xf32>
      %c0_20 = arith.constant 0 : index
      %c0_21 = arith.constant 0 : index
      %54 = vector.load %arg6[%c0_20, %c0_21] : memref<1x1xf32, #tpu.memory_space<vmem>>, vector<1x1xf32>
      tpu.vector_store %arg6[%c0_20, %c0_21], %53 {strides = array<i32>} : memref<1x1xf32, #tpu.memory_space<vmem>>, vector<1x1xf32>,
    } else {
    }
    return
  }
  func.func @transform_0(%arg0: i32, %arg1: i32) -> (i32, i32) {
    %c0_i32 = arith.constant 0 : i32
    %c0_i32_0 = arith.constant 0 : i32
    return %arg0, %c0_i32 : i32, i32
  }
  func.func @transform_1(%arg0: i32, %arg1: i32) -> (i32, i32) {
    %c0_i32 = arith.constant 0 : i32
    %c0_i32_0 = arith.constant 0 : i32
    return %c0_i32, %arg1 : i32, i32
  }
  func.func @transform_2(%arg0: i32, %arg1: i32) -> (i32, i32) {
    %c0_i32 = arith.constant 0 : i32
    %c0_i32_0 = arith.constant 0 : i32
    return %c0_i32, %arg1 : i32, i32
  }
  func.func @transform_3(%arg0: i32, %arg1: i32) -> (i32, i32) {
    %c0_i32 = arith.constant 0 : i32
    %c0_i32_0 = arith.constant 0 : i32
    return %arg0, %c0_i32 : i32, i32
  }
  func.func @transform_4(%arg0: i32, %arg1: i32) -> (i32, i32) {
    %c0_i32 = arith.constant 0 : i32
    %c0_i32_0 = arith.constant 0 : i32
    return %arg0, %c0_i32 : i32, i32
  }
}

</mosaic_0001>

<llo_original>
// kernel: bert_model_with_loss.13
$region0: #{bert_model_with_loss.13}
  #allocation0 [shape = 'u32[]', space=smem, size = 0x4, offset = 0x4, fixed_abs, tag = 'smem constant byte address 0x4 - core index']
  #allocation1 [shape = 'u32[72,128]{1,0:T(1,128)}', space=vmem, size = 0x9000, scoped, tag = 'internal scratch']
  %s0 = inlined_call_operand.vmem [shape: bf16[16,32], index: 0, kind: input, shape index: {}]
  %s1 = inlined_call_operand.vmem [shape: bf16[32,32], index: 1, kind: input, shape index: {}]
  %s2 = inlined_call_operand.vmem [shape: f32[1,32], index: 2, kind: input, shape index: {}]
  %s3 = inlined_call_operand.vmem [shape: bf16[16,32], index: 3, kind: input, shape index: {}]
  %s4 = inlined_call_operand.vmem [shape: f32[1,32], index: 4, kind: input, shape index: {}]
  %s5 = inlined_call_operand.vmem [shape: f32[1,32], index: 5, kind: input, shape index: {}]
  %s6 = inlined_call_operand.vmem [shape: bf16[16,32], index: 6, kind: output, shape index: {}]
  %s7 = sld [smem:[#allocation0]]
  $region34: #{bert_model_with_loss.13} parent=0
    _
  %s9 = ssub.s32 1, %s7
  %s10 = scalar_select 0, %s9, %s7
  // Predicated region
  $region2: #{bert_model_with_loss.13} parent=0 // pred_check
    _
  $region3: #{bert_model_with_loss.13} parent=0 // pred_check_branch
    %12 = sbr.rel (0) target = $region5
  $region4: #{bert_model_with_loss.13} parent=0 // pred_region
    _
  $region5: #{bert_model_with_loss.13} parent=0 // pred_fallthru
    _
  // Predicated region
  $region6: #{bert_model_with_loss.13} parent=0 // pred_check
    _
  $region7: #{bert_model_with_loss.13} parent=0 // pred_check_branch
    %14 = sbr.rel (0) target = $region9
  $region8: #{bert_model_with_loss.13} parent=0 // pred_region
    _
  $region9: #{bert_model_with_loss.13} parent=0 // pred_fallthru
    _
  // Predicated region
  $region10: #{bert_model_with_loss.13} parent=0 // pred_check
    _
  $region11: #{bert_model_with_loss.13} parent=0 // pred_check_branch
    %16 = sbr.rel (0) target = $region13
  $region12: #{bert_model_with_loss.13} parent=0 // pred_region
    _
  $region13: #{bert_model_with_loss.13} parent=0 // pred_fallthru
    _
  // Predicated region
  $region14: #{bert_model_with_loss.13} parent=0 // pred_check
    _
  $region15: #{bert_model_with_loss.13} parent=0 // pred_check_branch
    %18 = sbr.rel (0) target = $region17
  $region16: #{bert_model_with_loss.13} parent=0 // pred_region
    _
  $region17: #{bert_model_with_loss.13} parent=0 // pred_fallthru
    _
  // Predicated region
  $region18: #{bert_model_with_loss.13} parent=0 // pred_check
    _
  $region19: #{bert_model_with_loss.13} parent=0 // pred_check_branch
    %20 = sbr.rel (0) target = $region21
  $region20: #{bert_model_with_loss.13} parent=0 // pred_region
    _
  $region21: #{bert_model_with_loss.13} parent=0 // pred_fallthru
    _
  // Predicated region
  $region22: #{bert_model_with_loss.13} parent=0 // pred_check
    _
  $region23: #{bert_model_with_loss.13} parent=0 // pred_check_branch
    %22 = sbr.rel (0) target = $region25
  $region24: #{bert_model_with_loss.13} parent=0 // pred_region
    _
  $region25: #{bert_model_with_loss.13} parent=0 // pred_fallthru
    _
  %v24 = vld [vmem:[%s0] sm:$0xf]
  %v25 = vld [vmem:[%s0 + $0x4] sm:$0xf]
  %v26 = vld [vmem:[%s1] sm:$0xf]
  %v27 = vld [vmem:[%s1 + $0x4] sm:$0xf]
  %v28 = vld [vmem:[%s1 + $0x8] sm:$0xf]
  %v29 = vld [vmem:[%s1 + $0xc] sm:$0xf]
  %v30 = vld [vmem:[%s2] sm:$0x1]
  %v32 = vperm.slane %v30, 0
  %v36 = vunpack.c.l.b16 %v24
  %v37 = vunpack.c.l.b16 %v25
  %v38 = vpack.c.b16 %v37, %v36
  %v43 = vunpack.c.l.b16 %v26
  %v44 = vunpack.c.l.b16 %v27
  %v45 = vunpack.c.l.b16 %v28
  %v46 = vunpack.c.l.b16 %v29
  %v47 = vpack.c.b16 %v44, %v43
  %v48 = vpack.c.b16 %v46, %v45
  %vm51 = vcmask 261120
  %v53 = vsel %vm51, %v38, 0
  %55 = vmatpush.bf16.msra.mxu0 0
  %56 = vmatpush.bf16.msra.mxu0 0
  %57 = vmatpush.bf16.msra.mxu0 0
  %58 = vmatpush.bf16.msra.mxu0 0
  %59 = vmatpush.bf16.msra.mxu0 0
  %60 = vmatpush.bf16.msra.mxu0 0
  %61 = vmatpush.bf16.msra.mxu0 %v48
  %62 = vmatpush.bf16.msra.mxu0 %v47
  %63 = vmatmul.bf16.gmra.mxu0 %v53
  %v64 = vpop.f32.mrf.mxu0
  %v65 = vadd.f32 %v32, %v64
  %v66 = vpop.f32.mrf.mxu0
  %v67 = vadd.f32 %v32, %v66
  %68 = vdwg.mxu0
  %v69 = vld [vmem:[%s3] sm:$0xf]
  %v70 = vld [vmem:[%s3 + $0x4] sm:$0xf]
  %v71 = vunpack.c.l.bf16 %v69
  %v72 = vunpack.c.l.bf16 %v70
  %v73 = vadd.f32 %v65, %v71
  %v74 = vadd.f32 %v67, %v72
  %v75 = vld [vmem:[%s4] sm:$0x1]
  %v76 = vld [vmem:[%s5] sm:$0x1]
  %v77 = vsel %vm51, %v73, 0.0
  %78 = vadd.xlane.f32.xlu0 %v77
  %v79 = vpop.xlane.xlu0 %78
  %v80 = vsel %vm51, %v74, 0.0
  %81 = vadd.xlane.f32.xlu0 %v80
  %v82 = vpop.xlane.xlu0 %81
  %v83 = vrcp.pop 32.0
  %v84 = vmul.f32 32.0, %v83
  %v85 = vsub.f32 1.0, %v84
  %v86 = vmul.f32 %v83, %v85
  %v87 = vadd.f32 %v83, %v86
  %vm88 = vweird.f32 %v83
  %v89 = vsel %vm88, %v83, %v87
  %v90 = vmul.f32 %v79, %v89
  %v91 = vmul.f32 %v82, %v89
  %v92 = vsub.f32 %v73, %v90
  %v93 = vsub.f32 %v74, %v91
  %v94 = vmul.f32 %v92, %v92
  %v95 = vmul.f32 %v93, %v93
  %v96 = vsel %vm51, %v94, 0.0
  %97 = vadd.xlane.f32.xlu0 %v96
  %v98 = vpop.xlane.xlu0 %97
  %v99 = vsel %vm51, %v95, 0.0
  %100 = vadd.xlane.f32.xlu0 %v99
  %v101 = vpop.xlane.xlu0 %100
  %v102 = vmul.f32 %v98, %v89
  %v103 = vmul.f32 %v101, %v89
  %v104 = vadd.f32 %v102, 1e-12
  %v105 = vadd.f32 %v103, 1e-12
  %v106 = vrsqrt.pop %v104
  %v107 = vmul.f32 %v106, %v104
  %v108 = vmul.f32 %v107, %v106
  %v109 = vmul.f32 0.5, %v108
  %v110 = vsub.f32 1.5, %v109
  %v111 = vmul.f32 %v106, %v110
  %vm112 = vweird.f32 %v104
  %vm113 = vweird.f32 %v106
  %vm114 = vmor %vm112, %vm113
  %v115 = vsel %vm114, %v106, %v111
  %v116 = vrsqrt.pop %v105
  %v117 = vmul.f32 %v116, %v105
  %v118 = vmul.f32 %v117, %v116
  %v119 = vmul.f32 0.5, %v118
  %v120 = vsub.f32 1.5, %v119
  %v121 = vmul.f32 %v116, %v120
  %vm122 = vweird.f32 %v105
  %vm123 = vweird.f32 %v116
  %vm124 = vmor %vm122, %vm123
  %v125 = vsel %vm124, %v116, %v121
  %v126 = vmul.f32 %v92, %v115
  %v127 = vmul.f32 %v93, %v125
  %v129 = vperm.slane %v75, 0
  %v131 = vmul.f32 %v126, %v129
  %v132 = vmul.f32 %v127, %v129
  %v134 = vperm.slane %v76, 0
  %v136 = vadd.f32 %v131, %v134
  %v137 = vadd.f32 %v132, %v134
  %v138 = vpack.c.bf16 %v136, %v136
  %v139 = vpack.c.bf16 %v137, %v137
  %vm140 = vcmask 257024
  %141 = vst.msk [vmem:[%s6] sm:$0xf] %vm140, %v138
  %142 = vst.msk [vmem:[%s6 + $0x4] sm:$0xf] %vm140, %v139
  // Predicated region
  $region26: #{bert_model_with_loss.13} parent=0 // pred_check
    _
  $region27: #{bert_model_with_loss.13} parent=0 // pred_check_branch
    %144 = sbr.rel (0) target = $region29
  $region28: #{bert_model_with_loss.13} parent=0 // pred_region
    _
  $region29: #{bert_model_with_loss.13} parent=0 // pred_fallthru
    _
  // Predicated region
  $region30: #{bert_model_with_loss.13} parent=0 // pred_check
    _
  $region31: #{bert_model_with_loss.13} parent=0 // pred_check_branch
    %146 = sbr.rel (0) target = $region33
  $region32: #{bert_model_with_loss.13} parent=0 // pred_region
    _
  $region33: #{bert_model_with_loss.13} parent=0 // pred_fallthru
    _

// kernel: bert_model_with_loss.14
$region0: #{bert_model_with_loss.14}
  #allocation0 [shape = 'u32[]', space=smem, size = 0x4, offset = 0x4, fixed_abs, tag = 'smem constant byte address 0x4 - core index']
  #allocation1 [shape = 'u32[72,128]{1,0:T(1,128)}', space=vmem, size = 0x9000, scoped, tag = 'internal scratch']
  %s0 = inlined_call_operand.vmem [shape: bf16[16,32], index: 0, kind: input, shape index: {}]
  %s1 = inlined_call_operand.vmem [shape: bf16[32,64], index: 1, kind: input, shape index: {}]
  %s2 = inlined_call_operand.vmem [shape: f32[1,64], index: 2, kind: input, shape index: {}]
  %s3 = inlined_call_operand.vmem [shape: bf16[16,64], index: 3, kind: output, shape index: {}]
  %s4 = sld [smem:[#allocation0]]
  $region22: #{bert_model_with_loss.14} parent=0
    _
  %s6 = ssub.s32 1, %s4
  %s7 = scalar_select 0, %s6, %s4
  // Predicated region
  $region2: #{bert_model_with_loss.14} parent=0 // pred_check
    _
  $region3: #{bert_model_with_loss.14} parent=0 // pred_check_branch
    %9 = sbr.rel (0) target = $region5
  $region4: #{bert_model_with_loss.14} parent=0 // pred_region
    _
  $region5: #{bert_model_with_loss.14} parent=0 // pred_fallthru
    _
  // Predicated region
  $region6: #{bert_model_with_loss.14} parent=0 // pred_check
    _
  $region7: #{bert_model_with_loss.14} parent=0 // pred_check_branch
    %11 = sbr.rel (0) target = $region9
  $region8: #{bert_model_with_loss.14} parent=0 // pred_region
    _
  $region9: #{bert_model_with_loss.14} parent=0 // pred_fallthru
    _
  // Predicated region
  $region10: #{bert_model_with_loss.14} parent=0 // pred_check
    _
  $region11: #{bert_model_with_loss.14} parent=0 // pred_check_branch
    %13 = sbr.rel (0) target = $region13
  $region12: #{bert_model_with_loss.14} parent=0 // pred_region
    _
  $region13: #{bert_model_with_loss.14} parent=0 // pred_fallthru
    _
  %v15 = vld [vmem:[%s0] sm:$0xf]
  %v16 = vld [vmem:[%s0 + $0x4] sm:$0xf]
  %v17 = vld [vmem:[%s1] sm:$0xf]
  %v18 = vld [vmem:[%s1 + $0x4] sm:$0xf]
  %v19 = vld [vmem:[%s1 + $0x8] sm:$0xf]
  %v20 = vld [vmem:[%s1 + $0xc] sm:$0xf]
  %v21 = vld [vmem:[%s2] sm:$0x1]
  %v23 = vperm.slane %v21, 0
  %v27 = vunpack.c.l.b16 %v15
  %v28 = vunpack.c.l.b16 %v16
  %v29 = vpack.c.b16 %v28, %v27
  %v34 = vunpack.c.l.b16 %v17
  %v35 = vunpack.c.l.b16 %v18
  %v36 = vunpack.c.l.b16 %v19
  %v37 = vunpack.c.l.b16 %v20
  %v38 = vpack.c.b16 %v35, %v34
  %v39 = vpack.c.b16 %v37, %v36
  %vm42 = vcmask 261120
  %v44 = vsel %vm42, %v29, 0
  %46 = vmatpush.bf16.msra.mxu0 0
  %47 = vmatpush.bf16.msra.mxu0 0
  %48 = vmatpush.bf16.msra.mxu0 0
  %49 = vmatpush.bf16.msra.mxu0 0
  %50 = vmatpush.bf16.msra.mxu0 0
  %51 = vmatpush.bf16.msra.mxu0 0
  %52 = vmatpush.bf16.msra.mxu0 %v39
  %53 = vmatpush.bf16.msra.mxu0 %v38
  %54 = vmatmul.bf16.gmra.mxu0 %v44
  %v55 = vpop.f32.mrf.mxu0
  %v56 = vadd.f32 %v23, %v55
  %v57 = vpop.f32.mrf.mxu0
  %v58 = vadd.f32 %v23, %v57
  %59 = vdwg.mxu0
  %v60 = vmul.f32 %v56, %v56
  %v61 = vmul.f32 %v58, %v58
  %v62 = vmul.f32 %v56, %v60
  %v63 = vmul.f32 %v58, %v61
  %v64 = vmul.f32 %v62, 0.044715
  %v65 = vmul.f32 %v63, 0.044715
  %v66 = vadd.f32 %v56, %v64
  %v67 = vadd.f32 %v58, %v65
  %v68 = vmul.f32 %v66, 0.7978846
  %v69 = vmul.f32 %v67, 0.7978846
  %v70 = vtanh.pop %v68
  %v71 = vtanh.pop %v69
  %v72 = vadd.f32 %v70, 1.0
  %v73 = vadd.f32 %v71, 1.0
  %v74 = vmul.f32 %v72, 0.5
  %v75 = vmul.f32 %v73, 0.5
  %v76 = vmul.f32 %v56, %v74
  %v77 = vmul.f32 %v58, %v75
  %v78 = vpack.c.bf16 %v76, %v76
  %v79 = vpack.c.bf16 %v77, %v77
  %vm80 = vcmask 519168
  %81 = vst.msk [vmem:[%s3] sm:$0xf] %vm80, %v78
  %82 = vst.msk [vmem:[%s3 + $0x4] sm:$0xf] %vm80, %v79
  // Predicated region
  $region14: #{bert_model_with_loss.14} parent=0 // pred_check
    _
  $region15: #{bert_model_with_loss.14} parent=0 // pred_check_branch
    %84 = sbr.rel (0) target = $region17
  $region16: #{bert_model_with_loss.14} parent=0 // pred_region
    _
  $region17: #{bert_model_with_loss.14} parent=0 // pred_fallthru
    _
  // Predicated region
  $region18: #{bert_model_with_loss.14} parent=0 // pred_check
    _
  $region19: #{bert_model_with_loss.14} parent=0 // pred_check_branch
    %86 = sbr.rel (0) target = $region21
  $region20: #{bert_model_with_loss.14} parent=0 // pred_region
    _
  $region21: #{bert_model_with_loss.14} parent=0 // pred_fallthru
    _

// kernel: bert_model_with_loss.11
$region0: #{bert_model_with_loss.11}
  #allocation0 [shape = 'u32[]', space=smem, size = 0x4, offset = 0x4, fixed_abs, tag = 'smem constant byte address 0x4 - core index']
  #allocation1 [shape = 'u32[72,128]{1,0:T(1,128)}', space=vmem, size = 0x9000, scoped, tag = 'internal scratch']
  %s0 = inlined_call_operand.vmem [shape: bf16[16,32], index: 0, kind: input, shape index: {}]
  %s1 = inlined_call_operand.vmem [shape: bf16[16,32], index: 1, kind: input, shape index: {}]
  %s2 = inlined_call_operand.vmem [shape: bf16[16,32], index: 2, kind: input, shape index: {}]
  %s3 = inlined_call_operand.vmem [shape: f32[1,32], index: 3, kind: input, shape index: {}]
  %s4 = inlined_call_operand.vmem [shape: f32[1,32], index: 4, kind: input, shape index: {}]
  %s5 = inlined_call_operand.vmem [shape: bf16[16,32], index: 5, kind: output, shape index: {}]
  %s6 = sld [smem:[#allocation0]]
  $region30: #{bert_model_with_loss.11} parent=0
    _
  %s8 = ssub.s32 1, %s6
  %s9 = scalar_select 0, %s8, %s6
  // Predicated region
  $region2: #{bert_model_with_loss.11} parent=0 // pred_check
    _
  $region3: #{bert_model_with_loss.11} parent=0 // pred_check_branch
    %11 = sbr.rel (0) target = $region5
  $region4: #{bert_model_with_loss.11} parent=0 // pred_region
    _
  $region5: #{bert_model_with_loss.11} parent=0 // pred_fallthru
    _
  // Predicated region
  $region6: #{bert_model_with_loss.11} parent=0 // pred_check
    _
  $region7: #{bert_model_with_loss.11} parent=0 // pred_check_branch
    %13 = sbr.rel (0) target = $region9
  $region8: #{bert_model_with_loss.11} parent=0 // pred_region
    _
  $region9: #{bert_model_with_loss.11} parent=0 // pred_fallthru
    _
  // Predicated region
  $region10: #{bert_model_with_loss.11} parent=0 // pred_check
    _
  $region11: #{bert_model_with_loss.11} parent=0 // pred_check_branch
    %15 = sbr.rel (0) target = $region13
  $region12: #{bert_model_with_loss.11} parent=0 // pred_region
    _
  $region13: #{bert_model_with_loss.11} parent=0 // pred_fallthru
    _
  // Predicated region
  $region14: #{bert_model_with_loss.11} parent=0 // pred_check
    _
  $region15: #{bert_model_with_loss.11} parent=0 // pred_check_branch
    %17 = sbr.rel (0) target = $region17
  $region16: #{bert_model_with_loss.11} parent=0 // pred_region
    _
  $region17: #{bert_model_with_loss.11} parent=0 // pred_fallthru
    _
  // Predicated region
  $region18: #{bert_model_with_loss.11} parent=0 // pred_check
    _
  $region19: #{bert_model_with_loss.11} parent=0 // pred_check_branch
    %19 = sbr.rel (0) target = $region21
  $region20: #{bert_model_with_loss.11} parent=0 // pred_region
    _
  $region21: #{bert_model_with_loss.11} parent=0 // pred_fallthru
    _
  %v20 = vld [vmem:[%s0] sm:$0xf]
  %v21 = vld [vmem:[%s0 + $0x4] sm:$0xf]
  %v22 = vunpack.c.l.bf16 %v20
  %v23 = vunpack.c.l.bf16 %v21
  %v24 = vld [vmem:[%s1] sm:$0xf]
  %v25 = vld [vmem:[%s1 + $0x4] sm:$0xf]
  %v26 = vunpack.c.l.bf16 %v24
  %v27 = vunpack.c.l.bf16 %v25
  %v28 = vadd.f32 %v22, %v26
  %v29 = vadd.f32 %v23, %v27
  %v30 = vld [vmem:[%s2] sm:$0xf]
  %v31 = vld [vmem:[%s2 + $0x4] sm:$0xf]
  %v32 = vunpack.c.l.bf16 %v30
  %v33 = vunpack.c.l.bf16 %v31
  %v34 = vadd.f32 %v28, %v32
  %v35 = vadd.f32 %v29, %v33
  %v36 = vld [vmem:[%s3] sm:$0x1]
  %v37 = vld [vmem:[%s4] sm:$0x1]
  %vm38 = vcmask 261120
  %v39 = vsel %vm38, %v34, 0.0
  %40 = vadd.xlane.f32.xlu0 %v39
  %v41 = vpop.xlane.xlu0 %40
  %v42 = vsel %vm38, %v35, 0.0
  %43 = vadd.xlane.f32.xlu0 %v42
  %v44 = vpop.xlane.xlu0 %43
  %v45 = vrcp.pop 32.0
  %v46 = vmul.f32 32.0, %v45
  %v47 = vsub.f32 1.0, %v46
  %v48 = vmul.f32 %v45, %v47
  %v49 = vadd.f32 %v45, %v48
  %vm50 = vweird.f32 %v45
  %v51 = vsel %vm50, %v45, %v49
  %v52 = vmul.f32 %v41, %v51
  %v53 = vmul.f32 %v44, %v51
  %v54 = vsub.f32 %v34, %v52
  %v55 = vsub.f32 %v35, %v53
  %v56 = vmul.f32 %v54, %v54
  %v57 = vmul.f32 %v55, %v55
  %v58 = vsel %vm38, %v56, 0.0
  %59 = vadd.xlane.f32.xlu0 %v58
  %v60 = vpop.xlane.xlu0 %59
  %v61 = vsel %vm38, %v57, 0.0
  %62 = vadd.xlane.f32.xlu0 %v61
  %v63 = vpop.xlane.xlu0 %62
  %v64 = vmul.f32 %v60, %v51
  %v65 = vmul.f32 %v63, %v51
  %v66 = vadd.f32 %v64, 1e-12
  %v67 = vadd.f32 %v65, 1e-12
  %v68 = vrsqrt.pop %v66
  %v69 = vmul.f32 %v68, %v66
  %v70 = vmul.f32 %v69, %v68
  %v71 = vmul.f32 0.5, %v70
  %v72 = vsub.f32 1.5, %v71
  %v73 = vmul.f32 %v68, %v72
  %vm74 = vweird.f32 %v66
  %vm75 = vweird.f32 %v68
  %vm76 = vmor %vm74, %vm75
  %v77 = vsel %vm76, %v68, %v73
  %v78 = vrsqrt.pop %v67
  %v79 = vmul.f32 %v78, %v67
  %v80 = vmul.f32 %v79, %v78
  %v81 = vmul.f32 0.5, %v80
  %v82 = vsub.f32 1.5, %v81
  %v83 = vmul.f32 %v78, %v82
  %vm84 = vweird.f32 %v67
  %vm85 = vweird.f32 %v78
  %vm86 = vmor %vm84, %vm85
  %v87 = vsel %vm86, %v78, %v83
  %v88 = vmul.f32 %v54, %v77
  %v89 = vmul.f32 %v55, %v87
  %v91 = vperm.slane %v36, 0
  %v93 = vmul.f32 %v88, %v91
  %v94 = vmul.f32 %v89, %v91
  %v96 = vperm.slane %v37, 0
  %v98 = vadd.f32 %v93, %v96
  %v99 = vadd.f32 %v94, %v96
  %v100 = vpack.c.bf16 %v98, %v98
  %v101 = vpack.c.bf16 %v99, %v99
  %vm102 = vcmask 257024
  %103 = vst.msk [vmem:[%s5] sm:$0xf] %vm102, %v100
  %104 = vst.msk [vmem:[%s5 + $0x4] sm:$0xf] %vm102, %v101
  // Predicated region
  $region22: #{bert_model_with_loss.11} parent=0 // pred_check
    _
  $region23: #{bert_model_with_loss.11} parent=0 // pred_check_branch
    %106 = sbr.rel (0) target = $region25
  $region24: #{bert_model_with_loss.11} parent=0 // pred_region
    _
  $region25: #{bert_model_with_loss.11} parent=0 // pred_fallthru
    _
  // Predicated region
  $region26: #{bert_model_with_loss.11} parent=0 // pred_check
    _
  $region27: #{bert_model_with_loss.11} parent=0 // pred_check_branch
    %108 = sbr.rel (0) target = $region29
  $region28: #{bert_model_with_loss.11} parent=0 // pred_region
    _
  $region29: #{bert_model_with_loss.11} parent=0 // pred_fallthru
    _

// kernel: bert_model_with_loss.12
$region0: #{bert_model_with_loss.12}
  #allocation0 [shape = 'u32[]', space=smem, size = 0x4, offset = 0x4, fixed_abs, tag = 'smem constant byte address 0x4 - core index']
  #allocation1 [shape = 'u32[72,128]{1,0:T(1,128)}', space=vmem, size = 0x9000, scoped, tag = 'internal scratch']
  %s0 = inlined_call_operand.vmem [shape: bf16[2,8,32], index: 0, kind: input, shape index: {}]
  %s1 = inlined_call_operand.vmem [shape: bf16[32,96], index: 1, kind: input, shape index: {}]
  %s2 = inlined_call_operand.vmem [shape: f32[1,96], index: 2, kind: input, shape index: {}]
  %s3 = inlined_call_operand.vmem [shape: f32[2,8], index: 3, kind: input, shape index: {}]
  %s4 = inlined_call_operand.vmem [shape: bf16[2,8,32], index: 4, kind: output, shape index: {}]
  %s5 = sld [smem:[#allocation0]]
  $region26: #{bert_model_with_loss.12} parent=0
    _
  %s7 = ssub.s32 1, %s5
  %s8 = scalar_select 0, %s7, %s5
  // Predicated region
  $region2: #{bert_model_with_loss.12} parent=0 // pred_check
    _
  $region3: #{bert_model_with_loss.12} parent=0 // pred_check_branch
    %10 = sbr.rel (0) target = $region5
  $region4: #{bert_model_with_loss.12} parent=0 // pred_region
    _
  $region5: #{bert_model_with_loss.12} parent=0 // pred_fallthru
    _
  // Predicated region
  $region6: #{bert_model_with_loss.12} parent=0 // pred_check
    _
  $region7: #{bert_model_with_loss.12} parent=0 // pred_check_branch
    %12 = sbr.rel (0) target = $region9
  $region8: #{bert_model_with_loss.12} parent=0 // pred_region
    _
  $region9: #{bert_model_with_loss.12} parent=0 // pred_fallthru
    _
  // Predicated region
  $region10: #{bert_model_with_loss.12} parent=0 // pred_check
    _
  $region11: #{bert_model_with_loss.12} parent=0 // pred_check_branch
    %14 = sbr.rel (0) target = $region13
  $region12: #{bert_model_with_loss.12} parent=0 // pred_region
    _
  $region13: #{bert_model_with_loss.12} parent=0 // pred_fallthru
    _
  // Predicated region
  $region14: #{bert_model_with_loss.12} parent=0 // pred_check
    _
  $region15: #{bert_model_with_loss.12} parent=0 // pred_check_branch
    %16 = sbr.rel (0) target = $region17
  $region16: #{bert_model_with_loss.12} parent=0 // pred_region
    _
  $region17: #{bert_model_with_loss.12} parent=0 // pred_fallthru
    _
  %v18 = vld [vmem:[%s0] sm:$0xf]
  %v19 = vld [vmem:[%s0 + $0x4] sm:$0xf]
  %v20 = vld [vmem:[%s1] sm:$0xf]
  %v21 = vld [vmem:[%s1 + $0x4] sm:$0xf]
  %v22 = vld [vmem:[%s1 + $0x8] sm:$0xf]
  %v23 = vld [vmem:[%s1 + $0xc] sm:$0xf]
  %v24 = vld [vmem:[%s2] sm:$0x1]
  %v26 = vperm.slane %v24, 0
  %v30 = vunpack.c.l.b16 %v18
  %v31 = vunpack.c.l.b16 %v19
  %v32 = vpack.c.b16 %v31, %v30
  %v37 = vunpack.c.l.b16 %v20
  %v38 = vunpack.c.l.b16 %v21
  %v39 = vunpack.c.l.b16 %v22
  %v40 = vunpack.c.l.b16 %v23
  %v41 = vpack.c.b16 %v38, %v37
  %v42 = vpack.c.b16 %v40, %v39
  %vm45 = vcmask 261120
  %v47 = vsel %vm45, %v32, 0
  %49 = vmatpush.bf16.msra.mxu0 0
  %50 = vmatpush.bf16.msra.mxu0 0
  %51 = vmatpush.bf16.msra.mxu0 0
  %52 = vmatpush.bf16.msra.mxu0 0
  %53 = vmatpush.bf16.msra.mxu0 0
  %54 = vmatpush.bf16.msra.mxu0 0
  %55 = vmatpush.bf16.msra.mxu0 %v42
  %56 = vmatpush.bf16.msra.mxu0 %v41
  %57 = vmatmul.bf16.gmra.mxu0 %v47
  %v58 = vpop.f32.mrf.mxu0
  %v59 = vadd.f32 %v26, %v58
  %v60 = vpop.f32.mrf.mxu0
  %v61 = vadd.f32 %v26, %v60
  %62 = vdwg.mxu0
  %v63 = vld [vmem:[%s3] sm:$0x3]
  %v65 = vrot.slane %v63, 1
  %v66 = vmul.f32 %v59, 0.25
  %v67 = vmul.f32 %v61, 0.25
  %v68 = vpack.c.bf16 %v66, %v66
  %v69 = vpack.c.bf16 %v67, %v67
  %v70 = vpack.c.bf16 %v59, %v59
  %v71 = vpack.c.bf16 %v61, %v61
  %v72 = vperm.slane %v63, 0
  %v73 = vperm.slane %v65, 0
  %v77 = vunpack.c.l.b16 %v70
  %v78 = vpack.c.b16 %v77, %v77
  %79 = vrot.lane.b32.xlu0 %v78, 96
  %v80 = vpop.permute.xlu0 %79
  %vm81 = vcmask 130048
  %v83 = vsel %vm81, %v68, 0
  %v86 = vsel %vm81, %v80, 0
  %88 = vmatpush.bf16.xpose.msra.mxu0 0
  %89 = vmatpush.bf16.xpose.msra.mxu0 0
  %90 = vmatpush.bf16.xpose.msra.mxu0 0
  %91 = vmatpush.bf16.xpose.msra.mxu0 0
  %92 = vmatpush.bf16.xpose.msra.mxu0 0
  %93 = vmatpush.bf16.xpose.msra.mxu0 0
  %94 = vmatpush.bf16.xpose.msra.mxu0 0
  %95 = vmatpush.bf16.xpose.msra.mxu0 %v86
  %96 = vmatmul.bf16.gmra.mxu0 %v83
  %v97 = vpop.f32.mrf.mxu0
  %v98 = vadd.f32 %v72, %v97
  %v99 = vpop.f32.mrf.mxu0
  %100 = vdwg.mxu0
  %v102 = vunpack.c.l.b16 %v71
  %v103 = vpack.c.b16 %v102, %v102
  %104 = vrot.lane.b32.xlu0 %v103, 96
  %v105 = vpop.permute.xlu0 %104
  %v107 = vsel %vm81, %v69, 0
  %v110 = vsel %vm81, %v105, 0
  %112 = vmatpush.bf16.xpose.msra.mxu0 0
  %113 = vmatpush.bf16.xpose.msra.mxu0 0
  %114 = vmatpush.bf16.xpose.msra.mxu0 0
  %115 = vmatpush.bf16.xpose.msra.mxu0 0
  %116 = vmatpush.bf16.xpose.msra.mxu0 0
  %117 = vmatpush.bf16.xpose.msra.mxu0 0
  %118 = vmatpush.bf16.xpose.msra.mxu0 0
  %119 = vmatpush.bf16.xpose.msra.mxu0 %v110
  %120 = vmatmul.bf16.gmra.mxu0 %v107
  %v121 = vpop.f32.mrf.mxu0
  %v122 = vadd.f32 %v73, %v121
  %v123 = vpop.f32.mrf.mxu0
  %124 = vdwg.mxu0
  %vm125 = vcmask 64512
  %v126 = vsel %vm125, %v98, -inf
  %127 = vmax.xlane.f32.xlu0 %v126
  %v128 = vpop.xlane.xlu0 %127
  %v129 = vsel %vm125, %v122, -inf
  %130 = vmax.xlane.f32.xlu0 %v129
  %v131 = vpop.xlane.xlu0 %130
  %v132 = vsub.f32 %v98, %v128
  %v133 = vsub.f32 %v122, %v131
  %v134 = vmul.f32 %v132, 1.442695
  %v135 = vpow.pop %v134
  %v136 = vmul.f32 %v133, 1.442695
  %v137 = vpow.pop %v136
  %v138 = vsel %vm125, %v135, 0.0
  %139 = vadd.xlane.f32.xlu0 %v138
  %v140 = vpop.xlane.xlu0 %139
  %v141 = vsel %vm125, %v137, 0.0
  %142 = vadd.xlane.f32.xlu0 %v141
  %v143 = vpop.xlane.xlu0 %142
  %v144 = vrcp.pop %v140
  %v145 = vrcp.pop %v143
  %v146 = vmul.f32 %v135, %v144
  %v147 = vmul.f32 %v137, %v145
  %v148 = vpack.c.bf16 %v146, %v146
  %v149 = vpack.c.bf16 %v147, %v147
  %150 = vrot.lane.b32.xlu0 %v78, 64
  %v151 = vpop.permute.xlu0 %150
  %v153 = vsel %vm125, %v148, 0
  %vm155 = vcmask 1043456
  %v157 = vsel %vm155, %v151, 0
  %159 = vmatpush.bf16.msra.mxu0 0
  %160 = vmatpush.bf16.msra.mxu0 0
  %161 = vmatpush.bf16.msra.mxu0 0
  %162 = vmatpush.bf16.msra.mxu0 0
  %163 = vmatpush.bf16.msra.mxu0 0
  %164 = vmatpush.bf16.msra.mxu0 0
  %165 = vmatpush.bf16.msra.mxu0 0
  %166 = vmatpush.bf16.msra.mxu0 %v157
  %167 = vmatmul.bf16.gmra.mxu0 %v153
  %v168 = vpop.f32.mrf.mxu0
  %v169 = vadd.f32 0.0, %v168
  %v170 = vpop.f32.mrf.mxu0
  %171 = vdwg.mxu0
  %172 = vrot.lane.b32.xlu0 %v103, 64
  %v173 = vpop.permute.xlu0 %172
  %v175 = vsel %vm125, %v149, 0
  %v178 = vsel %vm155, %v173, 0
  %180 = vmatpush.bf16.msra.mxu0 0
  %181 = vmatpush.bf16.msra.mxu0 0
  %182 = vmatpush.bf16.msra.mxu0 0
  %183 = vmatpush.bf16.msra.mxu0 0
  %184 = vmatpush.bf16.msra.mxu0 0
  %185 = vmatpush.bf16.msra.mxu0 0
  %186 = vmatpush.bf16.msra.mxu0 0
  %187 = vmatpush.bf16.msra.mxu0 %v178
  %188 = vmatmul.bf16.gmra.mxu0 %v175
  %v189 = vpop.f32.mrf.mxu0
  %v190 = vadd.f32 0.0, %v189
  %v191 = vpop.f32.mrf.mxu0
  %192 = vdwg.mxu0
  %v194 = vunpack.c.l.b16 %v68
  %v195 = vpack.c.b16 %v194, %v194
  %196 = vrot.lane.b32.xlu0 %v195, 112
  %v197 = vpop.permute.xlu0 %196
  %198 = vrot.lane.b32.xlu0 %v78, 80
  %v199 = vpop.permute.xlu0 %198
  %v201 = vsel %vm81, %v197, 0
  %v204 = vsel %vm81, %v199, 0
  %206 = vmatpush.bf16.xpose.msra.mxu0 0
  %207 = vmatpush.bf16.xpose.msra.mxu0 0
  %208 = vmatpush.bf16.xpose.msra.mxu0 0
  %209 = vmatpush.bf16.xpose.msra.mxu0 0
  %210 = vmatpush.bf16.xpose.msra.mxu0 0
  %211 = vmatpush.bf16.xpose.msra.mxu0 0
  %212 = vmatpush.bf16.xpose.msra.mxu0 0
  %213 = vmatpush.bf16.xpose.msra.mxu0 %v204
  %214 = vmatmul.bf16.gmra.mxu0 %v201
  %v215 = vpop.f32.mrf.mxu0
  %v216 = vadd.f32 %v72, %v215
  %v217 = vpop.f32.mrf.mxu0
  %218 = vdwg.mxu0
  %v220 = vunpack.c.l.b16 %v69
  %v221 = vpack.c.b16 %v220, %v220
  %222 = vrot.lane.b32.xlu0 %v221, 112
  %v223 = vpop.permute.xlu0 %222
  %224 = vrot.lane.b32.xlu0 %v103, 80
  %v225 = vpop.permute.xlu0 %224
  %v227 = vsel %vm81, %v223, 0
  %v230 = vsel %vm81, %v225, 0
  %232 = vmatpush.bf16.xpose.msra.mxu0 0
  %233 = vmatpush.bf16.xpose.msra.mxu0 0
  %234 = vmatpush.bf16.xpose.msra.mxu0 0
  %235 = vmatpush.bf16.xpose.msra.mxu0 0
  %236 = vmatpush.bf16.xpose.msra.mxu0 0
  %237 = vmatpush.bf16.xpose.msra.mxu0 0
  %238 = vmatpush.bf16.xpose.msra.mxu0 0
  %239 = vmatpush.bf16.xpose.msra.mxu0 %v230
  %240 = vmatmul.bf16.gmra.mxu0 %v227
  %v241 = vpop.f32.mrf.mxu0
  %v242 = vadd.f32 %v73, %v241
  %v243 = vpop.f32.mrf.mxu0
  %244 = vdwg.mxu0
  %v245 = vsel %vm125, %v216, -inf
  %246 = vmax.xlane.f32.xlu0 %v245
  %v247 = vpop.xlane.xlu0 %246
  %v248 = vsel %vm125, %v242, -inf
  %249 = vmax.xlane.f32.xlu0 %v248
  %v250 = vpop.xlane.xlu0 %249
  %v251 = vsub.f32 %v216, %v247
  %v252 = vsub.f32 %v242, %v250
  %v253 = vmul.f32 %v251, 1.442695
  %v254 = vpow.pop %v253
  %v255 = vmul.f32 %v252, 1.442695
  %v256 = vpow.pop %v255
  %v257 = vsel %vm125, %v254, 0.0
  %258 = vadd.xlane.f32.xlu0 %v257
  %v259 = vpop.xlane.xlu0 %258
  %v260 = vsel %vm125, %v256, 0.0
  %261 = vadd.xlane.f32.xlu0 %v260
  %v262 = vpop.xlane.xlu0 %261
  %v263 = vrcp.pop %v259
  %v264 = vrcp.pop %v262
  %v265 = vmul.f32 %v254, %v263
  %v266 = vmul.f32 %v256, %v264
  %v267 = vpack.c.bf16 %v265, %v265
  %v268 = vpack.c.bf16 %v266, %v266
  %269 = vrot.lane.b32.xlu0 %v78, 48
  %v270 = vpop.permute.xlu0 %269
  %v272 = vsel %vm125, %v267, 0
  %v275 = vsel %vm155, %v270, 0
  %277 = vmatpush.bf16.msra.mxu0 0
  %278 = vmatpush.bf16.msra.mxu0 0
  %279 = vmatpush.bf16.msra.mxu0 0
  %280 = vmatpush.bf16.msra.mxu0 0
  %281 = vmatpush.bf16.msra.mxu0 0
  %282 = vmatpush.bf16.msra.mxu0 0
  %283 = vmatpush.bf16.msra.mxu0 0
  %284 = vmatpush.bf16.msra.mxu0 %v275
  %285 = vmatmul.bf16.gmra.mxu0 %v272
  %v286 = vpop.f32.mrf.mxu0
  %v287 = vadd.f32 0.0, %v286
  %v288 = vpop.f32.mrf.mxu0
  %289 = vdwg.mxu0
  %290 = vrot.lane.b32.xlu0 %v103, 48
  %v291 = vpop.permute.xlu0 %290
  %v293 = vsel %vm125, %v268, 0
  %v296 = vsel %vm155, %v291, 0
  %298 = vmatpush.bf16.msra.mxu0 0
  %299 = vmatpush.bf16.msra.mxu0 0
  %300 = vmatpush.bf16.msra.mxu0 0
  %301 = vmatpush.bf16.msra.mxu0 0
  %302 = vmatpush.bf16.msra.mxu0 0
  %303 = vmatpush.bf16.msra.mxu0 0
  %304 = vmatpush.bf16.msra.mxu0 0
  %305 = vmatpush.bf16.msra.mxu0 %v296
  %306 = vmatmul.bf16.gmra.mxu0 %v293
  %v307 = vpop.f32.mrf.mxu0
  %v308 = vadd.f32 0.0, %v307
  %v309 = vpop.f32.mrf.mxu0
  %310 = vdwg.mxu0
  %313 = vrot.lane.b32.xlu0 %v287, 16
  %v314 = vpop.permute.xlu0 %313
  %315 = vrot.lane.b32.xlu0 %v308, 16
  %v316 = vpop.permute.xlu0 %315
  %v319 = vsel %vm81, %v169, %v314
  %v320 = vsel %vm81, %v190, %v316
  %v321 = vpack.c.bf16 %v319, %v319
  %v322 = vpack.c.bf16 %v320, %v320
  %vm323 = vcmask 257024
  %324 = vst.msk [vmem:[%s4] sm:$0xf] %vm323, %v321
  %325 = vst.msk [vmem:[%s4 + $0x4] sm:$0xf] %vm323, %v322
  // Predicated region
  $region18: #{bert_model_with_loss.12} parent=0 // pred_check
    _
  $region19: #{bert_model_with_loss.12} parent=0 // pred_check_branch
    %327 = sbr.rel (0) target = $region21
  $region20: #{bert_model_with_loss.12} parent=0 // pred_region
    _
  $region21: #{bert_model_with_loss.12} parent=0 // pred_fallthru
    _
  // Predicated region
  $region22: #{bert_model_with_loss.12} parent=0 // pred_check
    _
  $region23: #{bert_model_with_loss.12} parent=0 // pred_check_branch
    %329 = sbr.rel (0) target = $region25
  $region24: #{bert_model_with_loss.12} parent=0 // pred_region
    _
  $region25: #{bert_model_with_loss.12} parent=0 // pred_fallthru
    _

// kernel: bert_model_with_loss.15
$region0: #{bert_model_with_loss.15}
  #allocation0 [shape = 'u32[]', space=smem, size = 0x4, offset = 0x4, fixed_abs, tag = 'smem constant byte address 0x4 - core index']
  #allocation1 [shape = 'u32[72,128]{1,0:T(1,128)}', space=vmem, size = 0x9000, scoped, tag = 'internal scratch']
  %s0 = inlined_call_operand.vmem [shape: bf16[16,64], index: 0, kind: input, shape index: {}]
  %s1 = inlined_call_operand.vmem [shape: bf16[64,32], index: 1, kind: input, shape index: {}]
  %s2 = inlined_call_operand.vmem [shape: f32[1,32], index: 2, kind: input, shape index: {}]
  %s3 = inlined_call_operand.vmem [shape: bf16[16,32], index: 3, kind: input, shape index: {}]
  %s4 = inlined_call_operand.vmem [shape: f32[1,32], index: 4, kind: input, shape index: {}]
  %s5 = inlined_call_operand.vmem [shape: f32[1,32], index: 5, kind: input, shape index: {}]
  %s6 = inlined_call_operand.vmem [shape: bf16[16,32], index: 6, kind: output, shape index: {}]
  %s7 = sld [smem:[#allocation0]]
  $region34: #{bert_model_with_loss.15} parent=0
    _
  %s9 = ssub.s32 1, %s7
  %s10 = scalar_select 0, %s9, %s7
  // Predicated region
  $region2: #{bert_model_with_loss.15} parent=0 // pred_check
    _
  $region3: #{bert_model_with_loss.15} parent=0 // pred_check_branch
    %12 = sbr.rel (0) target = $region5
  $region4: #{bert_model_with_loss.15} parent=0 // pred_region
    _
  $region5: #{bert_model_with_loss.15} parent=0 // pred_fallthru
    _
  // Predicated region
  $region6: #{bert_model_with_loss.15} parent=0 // pred_check
    _
  $region7: #{bert_model_with_loss.15} parent=0 // pred_check_branch
    %14 = sbr.rel (0) target = $region9
  $region8: #{bert_model_with_loss.15} parent=0 // pred_region
    _
  $region9: #{bert_model_with_loss.15} parent=0 // pred_fallthru
    _
  // Predicated region
  $region10: #{bert_model_with_loss.15} parent=0 // pred_check
    _
  $region11: #{bert_model_with_loss.15} parent=0 // pred_check_branch
    %16 = sbr.rel (0) target = $region13
  $region12: #{bert_model_with_loss.15} parent=0 // pred_region
    _
  $region13: #{bert_model_with_loss.15} parent=0 // pred_fallthru
    _
  // Predicated region
  $region14: #{bert_model_with_loss.15} parent=0 // pred_check
    _
  $region15: #{bert_model_with_loss.15} parent=0 // pred_check_branch
    %18 = sbr.rel (0) target = $region17
  $region16: #{bert_model_with_loss.15} parent=0 // pred_region
    _
  $region17: #{bert_model_with_loss.15} parent=0 // pred_fallthru
    _
  // Predicated region
  $region18: #{bert_model_with_loss.15} parent=0 // pred_check
    _
  $region19: #{bert_model_with_loss.15} parent=0 // pred_check_branch
    %20 = sbr.rel (0) target = $region21
  $region20: #{bert_model_with_loss.15} parent=0 // pred_region
    _
  $region21: #{bert_model_with_loss.15} parent=0 // pred_fallthru
    _
  // Predicated region
  $region22: #{bert_model_with_loss.15} parent=0 // pred_check
    _
  $region23: #{bert_model_with_loss.15} parent=0 // pred_check_branch
    %22 = sbr.rel (0) target = $region25
  $region24: #{bert_model_with_loss.15} parent=0 // pred_region
    _
  $region25: #{bert_model_with_loss.15} parent=0 // pred_fallthru
    _
  %v24 = vld [vmem:[%s0] sm:$0xf]
  %v25 = vld [vmem:[%s0 + $0x4] sm:$0xf]
  %v26 = vld [vmem:[%s1] sm:$0xf]
  %v27 = vld [vmem:[%s1 + $0x4] sm:$0xf]
  %v28 = vld [vmem:[%s1 + $0x8] sm:$0xf]
  %v29 = vld [vmem:[%s1 + $0xc] sm:$0xf]
  %v30 = vld [vmem:[%s1 + $0x10] sm:$0xf]
  %v31 = vld [vmem:[%s1 + $0x14] sm:$0xf]
  %v32 = vld [vmem:[%s1 + $0x18] sm:$0xf]
  %v33 = vld [vmem:[%s1 + $0x1c] sm:$0xf]
  %v34 = vld [vmem:[%s2] sm:$0x1]
  %v36 = vperm.slane %v34, 0
  %v40 = vunpack.c.l.b16 %v24
  %v41 = vunpack.c.l.b16 %v25
  %v42 = vpack.c.b16 %v41, %v40
  %v51 = vunpack.c.l.b16 %v26
  %v52 = vunpack.c.l.b16 %v27
  %v53 = vunpack.c.l.b16 %v28
  %v54 = vunpack.c.l.b16 %v29
  %v55 = vunpack.c.l.b16 %v30
  %v56 = vunpack.c.l.b16 %v31
  %v57 = vunpack.c.l.b16 %v32
  %v58 = vunpack.c.l.b16 %v33
  %v59 = vpack.c.b16 %v52, %v51
  %v60 = vpack.c.b16 %v54, %v53
  %v61 = vpack.c.b16 %v56, %v55
  %v62 = vpack.c.b16 %v58, %v57
  %vm67 = vcmask 523264
  %v69 = vsel %vm67, %v42, 0
  %71 = vmatpush.bf16.msra.mxu0 0
  %72 = vmatpush.bf16.msra.mxu0 0
  %73 = vmatpush.bf16.msra.mxu0 0
  %74 = vmatpush.bf16.msra.mxu0 0
  %75 = vmatpush.bf16.msra.mxu0 %v62
  %76 = vmatpush.bf16.msra.mxu0 %v61
  %77 = vmatpush.bf16.msra.mxu0 %v60
  %78 = vmatpush.bf16.msra.mxu0 %v59
  %79 = vmatmul.bf16.gmra.mxu0 %v69
  %v80 = vpop.f32.mrf.mxu0
  %v81 = vadd.f32 %v36, %v80
  %v82 = vpop.f32.mrf.mxu0
  %v83 = vadd.f32 %v36, %v82
  %84 = vdwg.mxu0
  %v85 = vld [vmem:[%s3] sm:$0xf]
  %v86 = vld [vmem:[%s3 + $0x4] sm:$0xf]
  %v87 = vunpack.c.l.bf16 %v85
  %v88 = vunpack.c.l.bf16 %v86
  %v89 = vadd.f32 %v81, %v87
  %v90 = vadd.f32 %v83, %v88
  %v91 = vld [vmem:[%s4] sm:$0x1]
  %v92 = vld [vmem:[%s5] sm:$0x1]
  %vm93 = vcmask 261120
  %v94 = vsel %vm93, %v89, 0.0
  %95 = vadd.xlane.f32.xlu0 %v94
  %v96 = vpop.xlane.xlu0 %95
  %v97 = vsel %vm93, %v90, 0.0
  %98 = vadd.xlane.f32.xlu0 %v97
  %v99 = vpop.xlane.xlu0 %98
  %v100 = vrcp.pop 32.0
  %v101 = vmul.f32 32.0, %v100
  %v102 = vsub.f32 1.0, %v101
  %v103 = vmul.f32 %v100, %v102
  %v104 = vadd.f32 %v100, %v103
  %vm105 = vweird.f32 %v100
  %v106 = vsel %vm105, %v100, %v104
  %v107 = vmul.f32 %v96, %v106
  %v108 = vmul.f32 %v99, %v106
  %v109 = vsub.f32 %v89, %v107
  %v110 = vsub.f32 %v90, %v108
  %v111 = vmul.f32 %v109, %v109
  %v112 = vmul.f32 %v110, %v110
  %v113 = vsel %vm93, %v111, 0.0
  %114 = vadd.xlane.f32.xlu0 %v113
  %v115 = vpop.xlane.xlu0 %114
  %v116 = vsel %vm93, %v112, 0.0
  %117 = vadd.xlane.f32.xlu0 %v116
  %v118 = vpop.xlane.xlu0 %117
  %v119 = vmul.f32 %v115, %v106
  %v120 = vmul.f32 %v118, %v106
  %v121 = vadd.f32 %v119, 1e-12
  %v122 = vadd.f32 %v120, 1e-12
  %v123 = vrsqrt.pop %v121
  %v124 = vmul.f32 %v123, %v121
  %v125 = vmul.f32 %v124, %v123
  %v126 = vmul.f32 0.5, %v125
  %v127 = vsub.f32 1.5, %v126
  %v128 = vmul.f32 %v123, %v127
  %vm129 = vweird.f32 %v121
  %vm130 = vweird.f32 %v123
  %vm131 = vmor %vm129, %vm130
  %v132 = vsel %vm131, %v123, %v128
  %v133 = vrsqrt.pop %v122
  %v134 = vmul.f32 %v133, %v122
  %v135 = vmul.f32 %v134, %v133
  %v136 = vmul.f32 0.5, %v135
  %v137 = vsub.f32 1.5, %v136
  %v138 = vmul.f32 %v133, %v137
  %vm139 = vweird.f32 %v122
  %vm140 = vweird.f32 %v133
  %vm141 = vmor %vm139, %vm140
  %v142 = vsel %vm141, %v133, %v138
  %v143 = vmul.f32 %v109, %v132
  %v144 = vmul.f32 %v110, %v142
  %v146 = vperm.slane %v91, 0
  %v148 = vmul.f32 %v143, %v146
  %v149 = vmul.f32 %v144, %v146
  %v151 = vperm.slane %v92, 0
  %v153 = vadd.f32 %v148, %v151
  %v154 = vadd.f32 %v149, %v151
  %v155 = vpack.c.bf16 %v153, %v153
  %v156 = vpack.c.bf16 %v154, %v154
  %vm157 = vcmask 257024
  %158 = vst.msk [vmem:[%s6] sm:$0xf] %vm157, %v155
  %159 = vst.msk [vmem:[%s6 + $0x4] sm:$0xf] %vm157, %v156
  // Predicated region
  $region26: #{bert_model_with_loss.15} parent=0 // pred_check
    _
  $region27: #{bert_model_with_loss.15} parent=0 // pred_check_branch
    %161 = sbr.rel (0) target = $region29
  $region28: #{bert_model_with_loss.15} parent=0 // pred_region
    _
  $region29: #{bert_model_with_loss.15} parent=0 // pred_fallthru
    _
  // Predicated region
  $region30: #{bert_model_with_loss.15} parent=0 // pred_check
    _
  $region31: #{bert_model_with_loss.15} parent=0 // pred_check_branch
    %163 = sbr.rel (0) target = $region33
  $region32: #{bert_model_with_loss.15} parent=0 // pred_region
    _
  $region33: #{bert_model_with_loss.15} parent=0 // pred_fallthru
    _

// kernel: bert_model_with_loss.20
$region0: #{bert_model_with_loss.20}
  #allocation0 [shape = 'u32[]', space=smem, size = 0x4, offset = 0x4, fixed_abs, tag = 'smem constant byte address 0x4 - core index']
  #allocation1 [shape = 'u32[72,128]{1,0:T(1,128)}', space=vmem, size = 0x9000, scoped, tag = 'internal scratch']
  %s0 = inlined_call_operand.vmem [shape: bf16[16,32], index: 0, kind: input, shape index: {}]
  %s1 = inlined_call_operand.vmem [shape: bf16[32,32], index: 1, kind: input, shape index: {}]
  %s2 = inlined_call_operand.vmem [shape: f32[1,32], index: 2, kind: input, shape index: {}]
  %s3 = inlined_call_operand.vmem [shape: f32[1,32], index: 3, kind: input, shape index: {}]
  %s4 = inlined_call_operand.vmem [shape: f32[1,32], index: 4, kind: input, shape index: {}]
  %s5 = inlined_call_operand.vmem [shape: bf16[16,32], index: 5, kind: output, shape index: {}]
  %s6 = sld [smem:[#allocation0]]
  $region30: #{bert_model_with_loss.20} parent=0
    _
  %s8 = ssub.s32 1, %s6
  %s9 = scalar_select 0, %s8, %s6
  // Predicated region
  $region2: #{bert_model_with_loss.20} parent=0 // pred_check
    _
  $region3: #{bert_model_with_loss.20} parent=0 // pred_check_branch
    %11 = sbr.rel (0) target = $region5
  $region4: #{bert_model_with_loss.20} parent=0 // pred_region
    _
  $region5: #{bert_model_with_loss.20} parent=0 // pred_fallthru
    _
  // Predicated region
  $region6: #{bert_model_with_loss.20} parent=0 // pred_check
    _
  $region7: #{bert_model_with_loss.20} parent=0 // pred_check_branch
    %13 = sbr.rel (0) target = $region9
  $region8: #{bert_model_with_loss.20} parent=0 // pred_region
    _
  $region9: #{bert_model_with_loss.20} parent=0 // pred_fallthru
    _
  // Predicated region
  $region10: #{bert_model_with_loss.20} parent=0 // pred_check
    _
  $region11: #{bert_model_with_loss.20} parent=0 // pred_check_branch
    %15 = sbr.rel (0) target = $region13
  $region12: #{bert_model_with_loss.20} parent=0 // pred_region
    _
  $region13: #{bert_model_with_loss.20} parent=0 // pred_fallthru
    _
  // Predicated region
  $region14: #{bert_model_with_loss.20} parent=0 // pred_check
    _
  $region15: #{bert_model_with_loss.20} parent=0 // pred_check_branch
    %17 = sbr.rel (0) target = $region17
  $region16: #{bert_model_with_loss.20} parent=0 // pred_region
    _
  $region17: #{bert_model_with_loss.20} parent=0 // pred_fallthru
    _
  // Predicated region
  $region18: #{bert_model_with_loss.20} parent=0 // pred_check
    _
  $region19: #{bert_model_with_loss.20} parent=0 // pred_check_branch
    %19 = sbr.rel (0) target = $region21
  $region20: #{bert_model_with_loss.20} parent=0 // pred_region
    _
  $region21: #{bert_model_with_loss.20} parent=0 // pred_fallthru
    _
  %v21 = vld [vmem:[%s0] sm:$0xf]
  %v22 = vld [vmem:[%s0 + $0x4] sm:$0xf]
  %v23 = vld [vmem:[%s1] sm:$0xf]
  %v24 = vld [vmem:[%s1 + $0x4] sm:$0xf]
  %v25 = vld [vmem:[%s1 + $0x8] sm:$0xf]
  %v26 = vld [vmem:[%s1 + $0xc] sm:$0xf]
  %v27 = vld [vmem:[%s2] sm:$0x1]
  %v29 = vperm.slane %v27, 0
  %v33 = vunpack.c.l.b16 %v21
  %v34 = vunpack.c.l.b16 %v22
  %v35 = vpack.c.b16 %v34, %v33
  %v40 = vunpack.c.l.b16 %v23
  %v41 = vunpack.c.l.b16 %v24
  %v42 = vunpack.c.l.b16 %v25
  %v43 = vunpack.c.l.b16 %v26
  %v44 = vpack.c.b16 %v41, %v40
  %v45 = vpack.c.b16 %v43, %v42
  %vm48 = vcmask 261120
  %v50 = vsel %vm48, %v35, 0
  %52 = vmatpush.bf16.msra.mxu0 0
  %53 = vmatpush.bf16.msra.mxu0 0
  %54 = vmatpush.bf16.msra.mxu0 0
  %55 = vmatpush.bf16.msra.mxu0 0
  %56 = vmatpush.bf16.msra.mxu0 0
  %57 = vmatpush.bf16.msra.mxu0 0
  %58 = vmatpush.bf16.msra.mxu0 %v45
  %59 = vmatpush.bf16.msra.mxu0 %v44
  %60 = vmatmul.bf16.gmra.mxu0 %v50
  %v61 = vpop.f32.mrf.mxu0
  %v62 = vadd.f32 %v29, %v61
  %v63 = vpop.f32.mrf.mxu0
  %v64 = vadd.f32 %v29, %v63
  %65 = vdwg.mxu0
  %v66 = vmul.f32 %v62, %v62
  %v67 = vmul.f32 %v64, %v64
  %v68 = vmul.f32 %v62, %v66
  %v69 = vmul.f32 %v64, %v67
  %v70 = vmul.f32 %v68, 0.044715
  %v71 = vmul.f32 %v69, 0.044715
  %v72 = vadd.f32 %v62, %v70
  %v73 = vadd.f32 %v64, %v71
  %v74 = vmul.f32 %v72, 0.7978846
  %v75 = vmul.f32 %v73, 0.7978846
  %v76 = vtanh.pop %v74
  %v77 = vtanh.pop %v75
  %v78 = vadd.f32 %v76, 1.0
  %v79 = vadd.f32 %v77, 1.0
  %v80 = vmul.f32 %v78, 0.5
  %v81 = vmul.f32 %v79, 0.5
  %v82 = vmul.f32 %v62, %v80
  %v83 = vmul.f32 %v64, %v81
  %v84 = vld [vmem:[%s3] sm:$0x1]
  %v85 = vld [vmem:[%s4] sm:$0x1]
  %v86 = vsel %vm48, %v82, 0.0
  %87 = vadd.xlane.f32.xlu0 %v86
  %v88 = vpop.xlane.xlu0 %87
  %v89 = vsel %vm48, %v83, 0.0
  %90 = vadd.xlane.f32.xlu0 %v89
  %v91 = vpop.xlane.xlu0 %90
  %v92 = vrcp.pop 32.0
  %v93 = vmul.f32 32.0, %v92
  %v94 = vsub.f32 1.0, %v93
  %v95 = vmul.f32 %v92, %v94
  %v96 = vadd.f32 %v92, %v95
  %vm97 = vweird.f32 %v92
  %v98 = vsel %vm97, %v92, %v96
  %v99 = vmul.f32 %v88, %v98
  %v100 = vmul.f32 %v91, %v98
  %v101 = vsub.f32 %v82, %v99
  %v102 = vsub.f32 %v83, %v100
  %v103 = vmul.f32 %v101, %v101
  %v104 = vmul.f32 %v102, %v102
  %v105 = vsel %vm48, %v103, 0.0
  %106 = vadd.xlane.f32.xlu0 %v105
  %v107 = vpop.xlane.xlu0 %106
  %v108 = vsel %vm48, %v104, 0.0
  %109 = vadd.xlane.f32.xlu0 %v108
  %v110 = vpop.xlane.xlu0 %109
  %v111 = vmul.f32 %v107, %v98
  %v112 = vmul.f32 %v110, %v98
  %v113 = vadd.f32 %v111, 1e-12
  %v114 = vadd.f32 %v112, 1e-12
  %v115 = vrsqrt.pop %v113
  %v116 = vmul.f32 %v115, %v113
  %v117 = vmul.f32 %v116, %v115
  %v118 = vmul.f32 0.5, %v117
  %v119 = vsub.f32 1.5, %v118
  %v120 = vmul.f32 %v115, %v119
  %vm121 = vweird.f32 %v113
  %vm122 = vweird.f32 %v115
  %vm123 = vmor %vm121, %vm122
  %v124 = vsel %vm123, %v115, %v120
  %v125 = vrsqrt.pop %v114
  %v126 = vmul.f32 %v125, %v114
  %v127 = vmul.f32 %v126, %v125
  %v128 = vmul.f32 0.5, %v127
  %v129 = vsub.f32 1.5, %v128
  %v130 = vmul.f32 %v125, %v129
  %vm131 = vweird.f32 %v114
  %vm132 = vweird.f32 %v125
  %vm133 = vmor %vm131, %vm132
  %v134 = vsel %vm133, %v125, %v130
  %v135 = vmul.f32 %v101, %v124
  %v136 = vmul.f32 %v102, %v134
  %v138 = vperm.slane %v84, 0
  %v140 = vmul.f32 %v135, %v138
  %v141 = vmul.f32 %v136, %v138
  %v143 = vperm.slane %v85, 0
  %v145 = vadd.f32 %v140, %v143
  %v146 = vadd.f32 %v141, %v143
  %v147 = vpack.c.bf16 %v145, %v145
  %v148 = vpack.c.bf16 %v146, %v146
  %vm149 = vcmask 257024
  %150 = vst.msk [vmem:[%s5] sm:$0xf] %vm149, %v147
  %151 = vst.msk [vmem:[%s5 + $0x4] sm:$0xf] %vm149, %v148
  // Predicated region
  $region22: #{bert_model_with_loss.20} parent=0 // pred_check
    _
  $region23: #{bert_model_with_loss.20} parent=0 // pred_check_branch
    %153 = sbr.rel (0) target = $region25
  $region24: #{bert_model_with_loss.20} parent=0 // pred_region
    _
  $region25: #{bert_model_with_loss.20} parent=0 // pred_fallthru
    _
  // Predicated region
  $region26: #{bert_model_with_loss.20} parent=0 // pred_check
    _
  $region27: #{bert_model_with_loss.20} parent=0 // pred_check_branch
    %155 = sbr.rel (0) target = $region29
  $region28: #{bert_model_with_loss.20} parent=0 // pred_region
    _
  $region29: #{bert_model_with_loss.20} parent=0 // pred_fallthru
    _

// kernel: bert_model_with_loss.21
$region0: #{bert_model_with_loss.21}
  #allocation0 [shape = 'u32[]', space=smem, size = 0x4, offset = 0x4, fixed_abs, tag = 'smem constant byte address 0x4 - core index']
  #allocation1 [shape = 'u32[72,128]{1,0:T(1,128)}', space=vmem, size = 0x9000, scoped, tag = 'internal scratch']
  #allocation2 [shape = 'f32[16,3]{1,0:T(8,128)}', space=vmem, size = 0x2000, scoped, tag = 'scratch operand']
  %s0 = inlined_call_operand.vmem [shape: bf16[16,32], index: 0, kind: input, shape index: {}]
  %s1 = inlined_call_operand.vmem [shape: bf16[32,128], index: 1, kind: input, shape index: {}]
  %s2 = inlined_call_operand.vmem [shape: f32[1,128], index: 2, kind: input, shape index: {}]
  %s3 = inlined_call_operand.vmem [shape: s32[16,1], index: 3, kind: input, shape index: {}]
  %s4 = inlined_call_operand.hbm [shape: f32[1,1], index: 4, kind: output, shape index: {}]
  %s5 = sld [smem:[#allocation0]]
  $region34: #{bert_model_with_loss.21} parent=0
    _
  %s7 = ssub.s32 1, %s5
  %s8 = scalar_select 0, %s7, %s5
  $region1: #{bert_model_with_loss.21} parent=0
    #allocation3 [shape = 'u8[512]{0}', space=vmem, size = 0x400, scoped, tag = 'output window, operand 0, single buffered']
    #allocation4 [shape = 's32[1]{0}', space=sflag, size = 0x4, scoped, tag = 'scoped memory for bert_model_with_loss.21']
    %9 = vsyncpa [#allocation4], 0
    // Predicated region
    $region2: #{bert_model_with_loss.21} parent=1 // pred_check
      _
    $region3: #{bert_model_with_loss.21} parent=1 // pred_check_branch
      %11 = sbr.rel (0) target = $region5
    $region4: #{bert_model_with_loss.21} parent=1 // pred_region
      _
    $region5: #{bert_model_with_loss.21} parent=1 // pred_fallthru
      _
    // Predicated region
    $region6: #{bert_model_with_loss.21} parent=1 // pred_check
      _
    $region7: #{bert_model_with_loss.21} parent=1 // pred_check_branch
      %13 = sbr.rel (0) target = $region9
    $region8: #{bert_model_with_loss.21} parent=1 // pred_region
      _
    $region9: #{bert_model_with_loss.21} parent=1 // pred_fallthru
      _
    // Predicated region
    $region10: #{bert_model_with_loss.21} parent=1 // pred_check
      _
    $region11: #{bert_model_with_loss.21} parent=1 // pred_check_branch
      %15 = sbr.rel (0) target = $region13
    $region12: #{bert_model_with_loss.21} parent=1 // pred_region
      _
    $region13: #{bert_model_with_loss.21} parent=1 // pred_fallthru
      _
    // Predicated region
    $region14: #{bert_model_with_loss.21} parent=1 // pred_check
      _
    $region15: #{bert_model_with_loss.21} parent=1 // pred_check_branch
      %17 = sbr.rel (0) target = $region17
    $region16: #{bert_model_with_loss.21} parent=1 // pred_region
      _
    $region17: #{bert_model_with_loss.21} parent=1 // pred_fallthru
      _
    %p19 = scmp.eq.s32.totalorder 0, 0
    // Predicated region
    $region18: #{bert_model_with_loss.21} parent=1 // pred_check
      %p20 = pneg %p19
    $region19: #{bert_model_with_loss.21} parent=1 // pred_check_branch
      %22 = sbr.rel (%p20) target = $region21
    $region20: #{bert_model_with_loss.21} parent=1 // pred_region
      %v23 = vlaneseq
      %v24 = vand.u32 %v23, 127
      %vm25 = vcmp.eq.s32.totalorder %v24, 0
      %v26 = vsel %vm25, -1e+30, 0.0
      %vm27 = vcmask 23552
      %28 = vst.msk [vmem:[#allocation2] sm:$0xff] %vm27, %v26
      %29 = vst.msk [vmem:[#allocation2 + $0x8] sm:$0xff] %vm27, %v26
    $region21: #{bert_model_with_loss.21} parent=1 // pred_fallthru
      _
    %v30 = vld [vmem:[%s0] sm:$0xf]
    %v31 = vld [vmem:[%s0 + $0x4] sm:$0xf]
    %v32 = vld [vmem:[%s1] sm:$0xf]
    %v33 = vld [vmem:[%s1 + $0x4] sm:$0xf]
    %v34 = vld [vmem:[%s1 + $0x8] sm:$0xf]
    %v35 = vld [vmem:[%s1 + $0xc] sm:$0xf]
    %v36 = vld [vmem:[%s2] sm:$0x1]
    %v38 = vperm.slane %v36, 0
    %v42 = vunpack.c.l.b16 %v30
    %v43 = vunpack.c.l.b16 %v31
    %v44 = vpack.c.b16 %v43, %v42
    %v49 = vunpack.c.l.b16 %v32
    %v50 = vunpack.c.l.b16 %v33
    %v51 = vunpack.c.l.b16 %v34
    %v52 = vunpack.c.l.b16 %v35
    %v53 = vpack.c.b16 %v50, %v49
    %v54 = vpack.c.b16 %v52, %v51
    %vm57 = vcmask 261120
    %v59 = vsel %vm57, %v44, 0
    %61 = vmatpush.bf16.msra.mxu0 0
    %62 = vmatpush.bf16.msra.mxu0 0
    %63 = vmatpush.bf16.msra.mxu0 0
    %64 = vmatpush.bf16.msra.mxu0 0
    %65 = vmatpush.bf16.msra.mxu0 0
    %66 = vmatpush.bf16.msra.mxu0 0
    %67 = vmatpush.bf16.msra.mxu0 %v54
    %68 = vmatpush.bf16.msra.mxu0 %v53
    %69 = vmatmul.bf16.gmra.mxu0 %v59
    %v70 = vpop.f32.mrf.mxu0
    %v71 = vadd.f32 %v38, %v70
    %v72 = vpop.f32.mrf.mxu0
    %v73 = vadd.f32 %v38, %v72
    %74 = vdwg.mxu0
    %v75 = vld [vmem:[%s3] sm:$0xff]
    %v76 = vld [vmem:[%s3 + $0x8] sm:$0xff]
    %v77 = vld [vmem:[#allocation2] sm:$0xff]
    %v78 = vld [vmem:[#allocation2 + $0x8] sm:$0xff]
    %v79 = vlaneseq
    %v80 = vand.u32 %v79, 127
    %s81 = smul.u32 0, 128
    %v82 = vstv %s81
    %v83 = vadd.s32 %v80, %v82
    %84 = vset.pattern.permute.xlu0 0
    %85 = vperm.xlu0 %84, %v75
    %v86 = vpop.permute.xlu0 %85
    %87 = vset.pattern.permute.xlu0 0
    %88 = vperm.xlu0 %87, %v76
    %v89 = vpop.permute.xlu0 %88
    %vm90 = vcmp.eq.s32.totalorder %v83, %v86
    %vm91 = vcmp.eq.s32.totalorder %v83, %v89
    %v92 = vsel %vm90, %v71, 0.0
    %v93 = vsel %vm91, %v73, 0.0
    %94 = vadd.xlane.f32.xlu0 %v92
    %v95 = vpop.xlane.xlu0 %94
    %96 = vadd.xlane.f32.xlu0 %v93
    %v97 = vpop.xlane.xlu0 %96
    %v98 = vadd.f32 %v77, %v95
    %v99 = vadd.f32 %v78, %v97
    %100 = vmax.xlane.f32.xlu0 %v71
    %v101 = vpop.xlane.xlu0 %100
    %102 = vmax.xlane.f32.xlu0 %v73
    %v103 = vpop.xlane.xlu0 %102
    %v104 = vmax.f32 %v77, %v101
    %v105 = vmax.f32 %v78, %v103
    %v106 = vsub.f32 %v77, %v104
    %v107 = vsub.f32 %v78, %v105
    %v108 = vmul.f32 %v106, 1.442695
    %v109 = vpow.pop %v108
    %v110 = vmul.f32 %v107, 1.442695
    %v111 = vpow.pop %v110
    %114 = vrot.lane.b32.xlu0 %v109, 1
    %v115 = vpop.permute.xlu0 %114
    %116 = vrot.lane.b32.xlu0 %v111, 1
    %v117 = vpop.permute.xlu0 %116
    %v120 = vmul.f32 %v77, %v115
    %v121 = vmul.f32 %v78, %v117
    %123 = vset.pattern.permute.xlu0 0
    %124 = vperm.xlu0 %123, %v104
    %v125 = vpop.permute.xlu0 %124
    %128 = vset.pattern.permute.xlu0 0
    %129 = vperm.xlu0 %128, %v105
    %v130 = vpop.permute.xlu0 %129
    %v132 = vsub.f32 %v71, %v125
    %v133 = vsub.f32 %v73, %v130
    %v134 = vmul.f32 %v132, 1.442695
    %v135 = vpow.pop %v134
    %v136 = vmul.f32 %v133, 1.442695
    %v137 = vpow.pop %v136
    %138 = vadd.xlane.f32.xlu0 %v135
    %v139 = vpop.xlane.xlu0 %138
    %140 = vadd.xlane.f32.xlu0 %v137
    %v141 = vpop.xlane.xlu0 %140
    %v142 = vadd.f32 %v120, %v139
    %v143 = vadd.f32 %v121, %v141
    %vm144 = vcmask 7168
    %v145 = vsel %vm144, %v104, %v142
    %v146 = vsel %vm144, %v105, %v143
    %vm147 = vcmask 15360
    %v148 = vsel %vm147, %v145, %v98
    %v149 = vsel %vm147, %v146, %v99
    %vm150 = vcmask 23552
    %151 = vst.msk [vmem:[#allocation2] sm:$0xff] %vm150, %v148
    %152 = vst.msk [vmem:[#allocation2 + $0x8] sm:$0xff] %vm150, %v149
    // Predicated region
    $region22: #{bert_model_with_loss.21} parent=1 // pred_check
      %p153 = pneg %p19
    $region23: #{bert_model_with_loss.21} parent=1 // pred_check_branch
      %155 = sbr.rel (%p153) target = $region25
    $region24: #{bert_model_with_loss.21} parent=1 // pred_region
      %v156 = vlog2.pop %v142
      %v157 = vmul.f32 %v156, 0.6931472
      %v158 = vlog2.pop %v143
      %v159 = vmul.f32 %v158, 0.6931472
      %162 = vrot.lane.b32.xlu0 %v157, 127
      %v163 = vpop.permute.xlu0 %162
      %164 = vrot.lane.b32.xlu0 %v159, 127
      %v165 = vpop.permute.xlu0 %164
      %v168 = vadd.f32 %v104, %v163
      %v169 = vadd.f32 %v105, %v165
      %vm170 = vcmp.ne.s32.totalorder %v75, 4294967196
      %vm171 = vcmp.ne.s32.totalorder %v76, 4294967196
      %174 = vrot.lane.b32.xlu0 %v98, 126
      %v175 = vpop.permute.xlu0 %174
      %176 = vrot.lane.b32.xlu0 %v99, 126
      %v177 = vpop.permute.xlu0 %176
      %v180 = vsub.f32 %v168, %v175
      %v181 = vsub.f32 %v169, %v177
      %v182 = vsel %vm170, %v180, 0.0
      %v183 = vsel %vm171, %v181, 0.0
      %v184 = vsel %vm144, %v182, 0.0
      %v185 = vsel %vm144, %v183, 0.0
      %v186 = vadd.f32 %v184, %v185
      %187 = vadd.xlane.f32.xlu0 %v186
      %v188 = vpop.xlane.xlu0 %187
      %v189 = vrot.slane %v188, 4
      %v190 = vadd.f32 %v188, %v189
      %v191 = vrot.slane %v190, 2
      %v192 = vadd.f32 %v190, %v191
      %v193 = vrot.slane %v192, 1
      %v194 = vadd.f32 %v192, %v193
      %s195 = vtos %v194
      %v196 = vstv %s195
      %vm197 = vcmask 0
      %198 = vst.msk [vmem:[#allocation3] sm:$0x1] %vm197, %v196
    $region25: #{bert_model_with_loss.21} parent=1 // pred_fallthru
      _
    // Predicated region
    $region26: #{bert_model_with_loss.21} parent=1 // pred_check
      _
    $region27: #{bert_model_with_loss.21} parent=1 // pred_check_branch
      %200 = sbr.rel (0) target = $region29
    $region28: #{bert_model_with_loss.21} parent=1 // pred_region
      %202 = vsyncadd [#allocation4], 0
      %s204 = sshll.u32 [#allocation3], 4
      %s205 = int_to_ptr.vmem [resolvable:$true] %s204
      %s206 = sshll.u32 %s4, 4
      %s207 = int_to_ptr.hbm [resolvable:$true] %s206
      %209 = dma.vmem_to_hbm [thread:$0]  %s205, 16, %s207, [#allocation4]
    $region29: #{bert_model_with_loss.21} parent=1 // pred_fallthru
      _
    // Predicated region
    $region30: #{bert_model_with_loss.21} parent=1 // pred_check
      _
    $region31: #{bert_model_with_loss.21} parent=1 // pred_check_branch
      %211 = sbr.rel (0) target = $region33
    $region32: #{bert_model_with_loss.21} parent=1 // pred_region
      %213 = dma.done [#allocation4], 16
    $region33: #{bert_model_with_loss.21} parent=1 // pred_fallthru
      _
    %214 = vsyncpa [#allocation4], 1

</llo_original>
